<compile_context>
chip_gen: v5e
topology: v5e:2x2
jax: 0.10.0
libtpu: 0.0.40
codegen_flags: <defaults>
</compile_context>

<pallas_src>
import jax
import jax.numpy as jnp
from jax.experimental import pallas as pl
from jax.experimental.pallas import tpu as pltpu

_LANE = 128
_HALO_OFF = 16   # tile-aligned sublane offset of the row body inside the halo scratch


def _ceil_to(v, m):
    return ((v + m - 1) // m) * m


def _chip_info():
    """Best-effort (VMEM capacity, TensorCore count); conservative defaults."""
    vmem_cap = 128 * 1024 * 1024
    num_cores = 1
    try:
        info = pltpu.get_tpu_info()
        vmem_cap = int(getattr(info, "vmem_capacity_bytes", vmem_cap))
        for name in ("num_cores", "core_count", "tensorcore_count", "num_tensorcores"):
            val = getattr(info, name, None)
            if val:
                num_cores = int(val)
                break
    except Exception:
        pass
    return vmem_cap, num_cores


def _conv1x3_kernel(x_ref, w_ref, s_ref, b_ref, o_ref, xpad_ref):
    """Fused 1x3 conv + BN + SiLU on one tile of (N*H) rows.

    x_ref    : (TR, W, C_in)                  bf16  rows of (N*H)
    w_ref    : (3, C_in, Cp)                  bf16  per-tap conv weights
    s_ref    : (1, Cp)                        f32   folded BN scale
    b_ref    : (1, Cp)                        f32   folded BN bias
    o_ref    : (TR, W, Cp)                    bf16
    xpad_ref : (TR, _HALO_OFF + W + 1, C_in)  bf16  VMEM width-halo scratch
    """
    tr, w, c_in = x_ref.shape
    cp = o_ref.shape[-1]

    # Width halo lives only in VMEM (no HBM pre-pad): drop the tile into the
    # scratch at a tile-aligned sublane offset, read it back, and zero every
    # column outside the body (covers both halo columns; uninitialized scratch
    # columns are masked away, so no per-core init is required).
    xpad_ref[:, _HALO_OFF:_HALO_OFF + w, :] = x_ref[...]
    xp = xpad_ref[...]
    col = jax.lax.broadcasted_iota(jnp.int32, xp.shape, 1)
    body = (col >= _HALO_OFF) & (col < _HALO_OFF + w)
    xp = jnp.where(body, xp, jnp.zeros_like(xp))

    # Three width taps accumulated in f32 on the MXU (static unroll).
    # TODO(synk): a single K=3*C_in matmul would need an unaligned lane-dim
    # concatenate; kept as 3 accumulating dots for robust lowering.
    def tap(dw):
        xs = xp[:, _HALO_OFF - 1 + dw:_HALO_OFF - 1 + dw + w, :].reshape(tr * w, c_in)
        return jnp.dot(xs, w_ref[dw], preferred_element_type=jnp.float32)

    acc = tap(0) + tap(1) + tap(2)                       # (TR*W, Cp) f32

    # BN applied in f32 in the epilogue (not folded into the bf16 weights).
    y = acc * s_ref[...] + b_ref[...]
    # SiLU = y * sigmoid(y); sigmoid(y) = 0.5*(1 + tanh(y/2)) -> single EUP op.
    # (Kept in f32 so the same path is valid on v5e, which has no bf16 EUP.)
    act = 0.5 * y * (1.0 + jnp.tanh(0.5 * y))
    o_ref[...] = act.reshape(tr, w, cp).astype(o_ref.dtype)


def conv1x3_bn_silu(x_nchw, conv_w, gamma, beta, run_mean, run_var, eps=1e-5,
                    target_pixels_per_tile=8192):
    """x_nchw: (N, C_in, H, W); conv_w: (C_out, C_in, 1, 3). Returns (N, C_out, H, W)."""
    N, C_in, H, W = x_nchw.shape
    C_out = conv_w.shape[0]
    R = N * H

    # ---- output channel layout: lane-dense only if amplification <= 25% ----
    cp_pad = _ceil_to(C_out, _LANE)
    Cp = cp_pad if cp_pad * 4 <= C_out * 5 else C_out

    # ---- fold eval-mode BN into per-channel scale/bias (f32 epilogue) ----
    inv_std = jax.lax.rsqrt(run_var.astype(jnp.float32) + eps)
    scale = gamma.astype(jnp.float32) * inv_std
    bias = beta.astype(jnp.float32) - run_mean.astype(jnp.float32) * scale

    # per-tap weights: w_taps[dw, cin, cout] = conv_w[cout, cin, 0, dw]
    w_taps = jnp.transpose(conv_w[:, :, 0, :].astype(jnp.float32), (2, 1, 0))
    if Cp != C_out:
        w_taps = jnp.pad(w_taps, ((0, 0), (0, 0), (0, Cp - C_out)))
        scale = jnp.pad(scale, (0, Cp - C_out))
        bias = jnp.pad(bias, (0, Cp - C_out))
    w_taps = w_taps.astype(jnp.bfloat16)
    scale_p = scale.reshape(1, Cp).astype(jnp.float32)
    bias_p = bias.reshape(1, Cp).astype(jnp.float32)

    # ---- layout glue: NCHW -> (N*H, W, C_in) rows, bf16, no HBM width pad ----
    # TODO(synk): the NCHW<->NHWC transposes remain because the module API is
    # NCHW; an NHWC-native surrounding model would drop this glue entirely.
    x_rows = jnp.transpose(x_nchw, (0, 2, 3, 1)).reshape(R, W, C_in).astype(jnp.bfloat16)

    # ---- chip-aware tile size / VMEM budget ----
    vmem_cap, num_cores = _chip_info()
    vmem_limit = int(min(max(vmem_cap // 2, 32 * 1024 * 1024), 48 * 1024 * 1024))

    cin_l = _ceil_to(C_in, _LANE)     # VMEM lane padding of narrow channel dims
    cp_l = _ceil_to(Cp, _LANE)
    bytes_per_pixel = (2 * cin_l * 2      # input double buffer (bf16)
                       + 3 * cin_l * 2    # halo scratch + in-kernel input temps (bf16)
                       + 2 * cp_l * 2     # output double buffer (bf16)
                       + 2 * cp_l * 4)    # f32 accumulator / epilogue temps
    budget_pixels = max((vmem_limit // 2) // bytes_per_pixel, 8)
    target_pixels = min(target_pixels_per_tile, budget_pixels)

    TR = max(1, min(R, target_pixels // max(W, 1)))
    if num_cores >= 2 and TR >= R and R > 1:
        TR = (R + 1) // 2                 # give the second TensorCore work (v7x)
    R_pad = _ceil_to(R, TR)
    if R_pad != R:
        x_rows = jnp.pad(x_rows, ((0, R_pad - R), (0, 0), (0, 0)))
    grid = (R_pad // TR,)

    out = pl.pallas_call(
        _conv1x3_kernel,
        out_shape=jax.ShapeDtypeStruct((R_pad, W, Cp), jnp.bfloat16),
        grid_spec=pltpu.PrefetchScalarGridSpec(
            num_scalar_prefetch=0,
            grid=grid,
            in_specs=[
                pl.BlockSpec((TR, W, C_in), lambda i: (i, 0, 0)),   # row tile
                pl.BlockSpec((3, C_in, Cp), lambda i: (0, 0, 0)),   # resident weights
                pl.BlockSpec((1, Cp), lambda i: (0, 0)),            # resident BN scale
                pl.BlockSpec((1, Cp), lambda i: (0, 0)),            # resident BN bias
            ],
            out_specs=pl.BlockSpec((TR, W, Cp), lambda i: (i, 0, 0)),
            scratch_shapes=[pltpu.VMEM((TR, _HALO_OFF + W + 1, C_in), jnp.bfloat16)],
        ),
        compiler_params=pltpu.CompilerParams(
            dimension_semantics=("parallel",),
            vmem_limit_bytes=vmem_limit),
    )(x_rows, w_taps, scale_p, bias_p)

    # bf16 slice / reshape / transpose; cast back to the caller's dtype last so
    # the padded slab is only touched in bf16.
    out = out[:R, :, :C_out].reshape(N, H, W, C_out)
    return jnp.transpose(out, (0, 3, 1, 2)).astype(x_nchw.dtype)


def _reference(x_nchw, conv_w, gamma, beta, run_mean, run_var, eps=1e-5):
    """Pure-JAX f32 reference for sanity checking."""
    y = jax.lax.conv_general_dilated(
        x_nchw.astype(jnp.float32), conv_w.astype(jnp.float32),
        window_strides=(1, 1), padding=((0, 0), (1, 1)),
        dimension_numbers=("NCHW", "OIHW", "NCHW"))
    scale = (gamma / jnp.sqrt(run_var + eps)).reshape(1, -1, 1, 1)
    bias = (beta - run_mean * gamma / jnp.sqrt(run_var + eps)).reshape(1, -1, 1, 1)
    y = y * scale + bias
    return y * jax.nn.sigmoid(y)


if __name__ == "__main__":
    key = jax.random.PRNGKey(0)
    k_x, k_w, k_g, k_b, k_m, k_v = jax.random.split(key, 6)

    N, C_in, H, W = 2, 4, 16, 16
    C_out = 8

    x = jax.random.normal(k_x, (N, C_in, H, W), dtype=jnp.float32)
    conv_w = jax.random.normal(k_w, (C_out, C_in, 1, 3), dtype=jnp.float32) * 0.1
    gamma = 1.0 + 0.1 * jax.random.normal(k_g, (C_out,), dtype=jnp.float32)
    beta = 0.1 * jax.random.normal(k_b, (C_out,), dtype=jnp.float32)
    run_mean = 0.05 * jax.random.normal(k_m, (C_out,), dtype=jnp.float32)
    run_var = jnp.abs(1.0 + 0.1 * jax.random.normal(k_v, (C_out,), dtype=jnp.float32))

    out = conv1x3_bn_silu(x, conv_w, gamma, beta, run_mean, run_var)
    out = jax.block_until_ready(out)

    ref = _reference(x, conv_w, gamma, beta, run_mean, run_var)
    assert out.shape == (N, C_out, H, W)
    # bf16 MXU operands + bf16 output store -> bf16-appropriate tolerance.
    assert jnp.allclose(out, ref, atol=2e-2, rtol=2e-2), "mismatch vs reference"

    print("KERNEL_OK")
</pallas_src>

<mosaic_0001>
module attributes {stable_mosaic.version = 11 : i64} {
  func.func @_conv1x3_kernel(%arg0: i32, %arg1: memref<32x16x4xbf16, #tpu.memory_space<vmem>>, %arg2: memref<3x4x8xbf16, #tpu.memory_space<vmem>>, %arg3: memref<1x8xf32, #tpu.memory_space<vmem>>, %arg4: memref<1x8xf32, #tpu.memory_space<vmem>>, %arg5: memref<32x16x8xbf16, #tpu.memory_space<vmem>>, %arg6: memref<32x33x4xbf16, #tpu.memory_space<vmem>>) attributes {dimension_semantics = [#tpu.dimension_semantics<parallel>], iteration_bounds = array<i64: 1>, scalar_prefetch = 0 : i64, scratch_operands = 1 : i64, tpu.core_type = #tpu.core_type<tc>, window_params = [{transform_indices = @transform_0, window_bounds = array<i64: 32, 16, 4>}, {pipeline_mode = #tpu.pipeline_mode<synchronous>, transform_indices = @transform_1, window_bounds = array<i64: 3, 4, 8>}, {pipeline_mode = #tpu.pipeline_mode<synchronous>, transform_indices = @transform_2, window_bounds = array<i64: 1, 8>}, {pipeline_mode = #tpu.pipeline_mode<synchronous>, transform_indices = @transform_3, window_bounds = array<i64: 1, 8>}, {transform_indices = @transform_4, window_bounds = array<i64: 32, 16, 8>}]} {
    %c0 = arith.constant 0 : index
    %c0_0 = arith.constant 0 : index
    %c0_1 = arith.constant 0 : index
    %0 = vector.load %arg1[%c0, %c0_0, %c0_1] : memref<32x16x4xbf16, #tpu.memory_space<vmem>>, vector<32x16x4xbf16>
    %c0_2 = arith.constant 0 : index
    %c16 = arith.constant 16 : index
    %c0_3 = arith.constant 0 : index
    %1 = vector.load %arg6[%c0_2, %c16, %c0_3] : memref<32x33x4xbf16, #tpu.memory_space<vmem>>, vector<32x16x4xbf16>
    tpu.vector_store %arg6[%c0_2, %c16, %c0_3], %0 {strides = array<i32>} : memref<32x33x4xbf16, #tpu.memory_space<vmem>>, vector<32x16x4xbf16>,
    %c0_4 = arith.constant 0 : index
    %c0_5 = arith.constant 0 : index
    %c0_6 = arith.constant 0 : index
    %2 = vector.load %arg6[%c0_4, %c0_5, %c0_6] : memref<32x33x4xbf16, #tpu.memory_space<vmem>>, vector<32x33x4xbf16>
    %3 = tpu.iota {dimensions = array<i32: 1>} : vector<32x33x4xi32>
    %c16_i32 = arith.constant 16 : i32
    %4 = vector.broadcast %c16_i32 : i32 to vector<32x33x4xi32>
    %5 = arith.cmpi sge, %3, %4 : vector<32x33x4xi32>
    %c32_i32 = arith.constant 32 : i32
    %6 = vector.broadcast %c32_i32 : i32 to vector<32x33x4xi32>
    %7 = arith.cmpi slt, %3, %6 : vector<32x33x4xi32>
    %8 = arith.andi %5, %7 : vector<32x33x4xi1>
    %cst = arith.constant 0.000000e+00 : bf16
    %9 = vector.broadcast %cst : bf16 to vector<32x33x4xbf16>
    %10 = arith.select %8, %2, %9 : vector<32x33x4xi1>, vector<32x33x4xbf16>
    %11 = vector.extract_strided_slice %10 {offsets = [0, 15, 0], sizes = [32, 16, 4], strides = [1, 1, 1]} : vector<32x33x4xbf16> to vector<32x16x4xbf16>
    %12 = vector.shape_cast %11 : vector<32x16x4xbf16> to vector<512x4xbf16>
    %c0_7 = arith.constant 0 : index
    %c0_8 = arith.constant 0 : index
    %c0_9 = arith.constant 0 : index
    %13 = vector.load %arg2[%c0_7, %c0_8, %c0_9] : memref<3x4x8xbf16, #tpu.memory_space<vmem>>, vector<1x4x8xbf16>
    %14 = vector.shape_cast %13 : vector<1x4x8xbf16> to vector<4x8xbf16>
    %cst_10 = arith.constant dense<0.000000e+00> : vector<512x8xf32>
    %15 = tpu.matmul %12, %14, %cst_10 {dimension_numbers = #tpu.dot_dimension_numbers<[1], [0], [0], [1], [0, 0, 1, 1], [], []>} : vector<512x4xbf16>, vector<4x8xbf16>, vector<512x8xf32> -> vector<512x8xf32>
    %16 = vector.extract_strided_slice %10 {offsets = [0, 16, 0], sizes = [32, 16, 4], strides = [1, 1, 1]} : vector<32x33x4xbf16> to vector<32x16x4xbf16>
    %17 = vector.shape_cast %16 : vector<32x16x4xbf16> to vector<512x4xbf16>
    %c1 = arith.constant 1 : index
    %c0_11 = arith.constant 0 : index
    %c0_12 = arith.constant 0 : index
    %18 = vector.load %arg2[%c1, %c0_11, %c0_12] : memref<3x4x8xbf16, #tpu.memory_space<vmem>>, vector<1x4x8xbf16>
    %19 = vector.shape_cast %18 : vector<1x4x8xbf16> to vector<4x8xbf16>
    %cst_13 = arith.constant dense<0.000000e+00> : vector<512x8xf32>
    %20 = tpu.matmul %17, %19, %cst_13 {dimension_numbers = #tpu.dot_dimension_numbers<[1], [0], [0], [1], [0, 0, 1, 1], [], []>} : vector<512x4xbf16>, vector<4x8xbf16>, vector<512x8xf32> -> vector<512x8xf32>
    %21 = arith.addf %15, %20 : vector<512x8xf32>
    %22 = vector.extract_strided_slice %10 {offsets = [0, 17, 0], sizes = [32, 16, 4], strides = [1, 1, 1]} : vector<32x33x4xbf16> to vector<32x16x4xbf16>
    %23 = vector.shape_cast %22 : vector<32x16x4xbf16> to vector<512x4xbf16>
    %c2 = arith.constant 2 : index
    %c0_14 = arith.constant 0 : index
    %c0_15 = arith.constant 0 : index
    %24 = vector.load %arg2[%c2, %c0_14, %c0_15] : memref<3x4x8xbf16, #tpu.memory_space<vmem>>, vector<1x4x8xbf16>
    %25 = vector.shape_cast %24 : vector<1x4x8xbf16> to vector<4x8xbf16>
    %cst_16 = arith.constant dense<0.000000e+00> : vector<512x8xf32>
    %26 = tpu.matmul %23, %25, %cst_16 {dimension_numbers = #tpu.dot_dimension_numbers<[1], [0], [0], [1], [0, 0, 1, 1], [], []>} : vector<512x4xbf16>, vector<4x8xbf16>, vector<512x8xf32> -> vector<512x8xf32>
    %27 = arith.addf %21, %26 : vector<512x8xf32>
    %c0_17 = arith.constant 0 : index
    %c0_18 = arith.constant 0 : index
    %28 = vector.load %arg3[%c0_17, %c0_18] : memref<1x8xf32, #tpu.memory_space<vmem>>, vector<1x8xf32>
    %29 = vector.broadcast %28 : vector<1x8xf32> to vector<512x8xf32>
    %30 = arith.mulf %27, %29 : vector<512x8xf32>
    %c0_19 = arith.constant 0 : index
    %c0_20 = arith.constant 0 : index
    %31 = vector.load %arg4[%c0_19, %c0_20] : memref<1x8xf32, #tpu.memory_space<vmem>>, vector<1x8xf32>
    %32 = vector.broadcast %31 : vector<1x8xf32> to vector<512x8xf32>
    %33 = arith.addf %30, %32 : vector<512x8xf32>
    %cst_21 = arith.constant 5.000000e-01 : f32
    %34 = vector.broadcast %cst_21 : f32 to vector<512x8xf32>
    %35 = arith.mulf %34, %33 : vector<512x8xf32>
    %cst_22 = arith.constant 5.000000e-01 : f32
    %36 = vector.broadcast %cst_22 : f32 to vector<512x8xf32>
    %37 = arith.mulf %36, %33 : vector<512x8xf32>
    %38 = math.tanh %37 : vector<512x8xf32>
    %cst_23 = arith.constant 1.000000e+00 : f32
    %39 = vector.broadcast %cst_23 : f32 to vector<512x8xf32>
    %40 = arith.addf %39, %38 : vector<512x8xf32>
    %41 = arith.mulf %35, %40 : vector<512x8xf32>
    %42 = vector.shape_cast %41 : vector<512x8xf32> to vector<32x16x8xf32>
    %43 = arith.truncf %42 : vector<32x16x8xf32> to vector<32x16x8xbf16>
    %c0_24 = arith.constant 0 : index
    %c0_25 = arith.constant 0 : index
    %c0_26 = arith.constant 0 : index
    %44 = vector.load %arg5[%c0_24, %c0_25, %c0_26] : memref<32x16x8xbf16, #tpu.memory_space<vmem>>, vector<32x16x8xbf16>
    tpu.vector_store %arg5[%c0_24, %c0_25, %c0_26], %43 {strides = array<i32>} : memref<32x16x8xbf16, #tpu.memory_space<vmem>>, vector<32x16x8xbf16>,
    return
  }
  func.func @transform_0(%arg0: i32) -> (i32, i32, i32) {
    %c0_i32 = arith.constant 0 : i32
    %c0_i32_0 = arith.constant 0 : i32
    %c0_i32_1 = arith.constant 0 : i32
    return %arg0, %c0_i32, %c0_i32_0 : i32, i32, i32
  }
  func.func @transform_1(%arg0: i32) -> (i32, i32, i32) {
    %c0_i32 = arith.constant 0 : i32
    %c0_i32_0 = arith.constant 0 : i32
    %c0_i32_1 = arith.constant 0 : i32
    %c0_i32_2 = arith.constant 0 : i32
    return %c0_i32, %c0_i32_0, %c0_i32_1 : i32, i32, i32
  }
  func.func @transform_2(%arg0: i32) -> (i32, i32) {
    %c0_i32 = arith.constant 0 : i32
    %c0_i32_0 = arith.constant 0 : i32
    %c0_i32_1 = arith.constant 0 : i32
    return %c0_i32, %c0_i32_0 : i32, i32
  }
  func.func @transform_3(%arg0: i32) -> (i32, i32) {
    %c0_i32 = arith.constant 0 : i32
    %c0_i32_0 = arith.constant 0 : i32
    %c0_i32_1 = arith.constant 0 : i32
    return %c0_i32, %c0_i32_0 : i32, i32
  }
  func.func @transform_4(%arg0: i32) -> (i32, i32, i32) {
    %c0_i32 = arith.constant 0 : i32
    %c0_i32_0 = arith.constant 0 : i32
    %c0_i32_1 = arith.constant 0 : i32
    return %arg0, %c0_i32, %c0_i32_0 : i32, i32, i32
  }
}

</mosaic_0001>

<llo_original>
// kernel: tpu_custom_call.1
$region0: #{tpu_custom_call.1}
  #allocation0 [shape = 'u32[]', space=smem, size = 0x4, offset = 0x4, fixed_abs, tag = 'smem constant byte address 0x4 - core index']
  #allocation1 [shape = 'u32[72,128]{1,0:T(1,128)}', space=vmem, size = 0x9000, scoped, tag = 'internal scratch']
  #allocation2 [shape = 'bf16[32,33,4]{2,1,0:T(8,128)(2,1)}', space=vmem, size = 0x50000, scoped, tag = 'scratch operand']
  %s0 = inlined_call_operand.vmem [shape: bf16[32,16,4], index: 0, kind: input, shape index: {}]
  %s1 = inlined_call_operand.vmem [shape: bf16[3,4,8], index: 1, kind: input, shape index: {}]
  %s2 = inlined_call_operand.vmem [shape: f32[1,8], index: 2, kind: input, shape index: {}]
  %s3 = inlined_call_operand.vmem [shape: f32[1,8], index: 3, kind: input, shape index: {}]
  %s4 = inlined_call_operand.vmem [shape: bf16[32,16,8], index: 4, kind: output, shape index: {}]
  %s5 = sld [smem:[#allocation0]]
  $region26: #{tpu_custom_call.1} parent=0
    _
  %s7 = ssub.s32 1, %s5
  %s8 = scalar_select 0, %s7, %s5
  // Predicated region
  $region2: #{tpu_custom_call.1} parent=0 // pred_check
    _
  $region3: #{tpu_custom_call.1} parent=0 // pred_check_branch
    %10 = sbr.rel (0) target = $region5
  $region4: #{tpu_custom_call.1} parent=0 // pred_region
    _
  $region5: #{tpu_custom_call.1} parent=0 // pred_fallthru
    _
  // Predicated region
  $region6: #{tpu_custom_call.1} parent=0 // pred_check
    _
  $region7: #{tpu_custom_call.1} parent=0 // pred_check_branch
    %12 = sbr.rel (0) target = $region9
  $region8: #{tpu_custom_call.1} parent=0 // pred_region
    _
  $region9: #{tpu_custom_call.1} parent=0 // pred_fallthru
    _
  // Predicated region
  $region10: #{tpu_custom_call.1} parent=0 // pred_check
    _
  $region11: #{tpu_custom_call.1} parent=0 // pred_check_branch
    %14 = sbr.rel (0) target = $region13
  $region12: #{tpu_custom_call.1} parent=0 // pred_region
    _
  $region13: #{tpu_custom_call.1} parent=0 // pred_fallthru
    _
  // Predicated region
  $region14: #{tpu_custom_call.1} parent=0 // pred_check
    _
  $region15: #{tpu_custom_call.1} parent=0 // pred_check_branch
    %16 = sbr.rel (0) target = $region17
  $region16: #{tpu_custom_call.1} parent=0 // pred_region
    _
  $region17: #{tpu_custom_call.1} parent=0 // pred_fallthru
    _
  %v18 = vld [vmem:[%s0] sm:$0xf]
  %v19 = vld [vmem:[%s0 + $0x4] sm:$0xf]
  %v20 = vld [vmem:[%s0 + $0x8] sm:$0xf]
  %v21 = vld [vmem:[%s0 + $0xc] sm:$0xf]
  %v22 = vld [vmem:[%s0 + $0x10] sm:$0xf]
  %v23 = vld [vmem:[%s0 + $0x14] sm:$0xf]
  %v24 = vld [vmem:[%s0 + $0x18] sm:$0xf]
  %v25 = vld [vmem:[%s0 + $0x1c] sm:$0xf]
  %v26 = vld [vmem:[%s0 + $0x20] sm:$0xf]
  %v27 = vld [vmem:[%s0 + $0x24] sm:$0xf]
  %v28 = vld [vmem:[%s0 + $0x28] sm:$0xf]
  %v29 = vld [vmem:[%s0 + $0x2c] sm:$0xf]
  %v30 = vld [vmem:[%s0 + $0x30] sm:$0xf]
  %v31 = vld [vmem:[%s0 + $0x34] sm:$0xf]
  %v32 = vld [vmem:[%s0 + $0x38] sm:$0xf]
  %v33 = vld [vmem:[%s0 + $0x3c] sm:$0xf]
  %v34 = vld [vmem:[%s0 + $0x40] sm:$0xf]
  %v35 = vld [vmem:[%s0 + $0x44] sm:$0xf]
  %v36 = vld [vmem:[%s0 + $0x48] sm:$0xf]
  %v37 = vld [vmem:[%s0 + $0x4c] sm:$0xf]
  %v38 = vld [vmem:[%s0 + $0x50] sm:$0xf]
  %v39 = vld [vmem:[%s0 + $0x54] sm:$0xf]
  %v40 = vld [vmem:[%s0 + $0x58] sm:$0xf]
  %v41 = vld [vmem:[%s0 + $0x5c] sm:$0xf]
  %v42 = vld [vmem:[%s0 + $0x60] sm:$0xf]
  %v43 = vld [vmem:[%s0 + $0x64] sm:$0xf]
  %v44 = vld [vmem:[%s0 + $0x68] sm:$0xf]
  %v45 = vld [vmem:[%s0 + $0x6c] sm:$0xf]
  %v46 = vld [vmem:[%s0 + $0x70] sm:$0xf]
  %v47 = vld [vmem:[%s0 + $0x74] sm:$0xf]
  %v48 = vld [vmem:[%s0 + $0x78] sm:$0xf]
  %v49 = vld [vmem:[%s0 + $0x7c] sm:$0xf]
  %v50 = vld [vmem:[%s0 + $0x80] sm:$0xf]
  %v51 = vld [vmem:[%s0 + $0x84] sm:$0xf]
  %v52 = vld [vmem:[%s0 + $0x88] sm:$0xf]
  %v53 = vld [vmem:[%s0 + $0x8c] sm:$0xf]
  %v54 = vld [vmem:[%s0 + $0x90] sm:$0xf]
  %v55 = vld [vmem:[%s0 + $0x94] sm:$0xf]
  %v56 = vld [vmem:[%s0 + $0x98] sm:$0xf]
  %v57 = vld [vmem:[%s0 + $0x9c] sm:$0xf]
  %v58 = vld [vmem:[%s0 + $0xa0] sm:$0xf]
  %v59 = vld [vmem:[%s0 + $0xa4] sm:$0xf]
  %v60 = vld [vmem:[%s0 + $0xa8] sm:$0xf]
  %v61 = vld [vmem:[%s0 + $0xac] sm:$0xf]
  %v62 = vld [vmem:[%s0 + $0xb0] sm:$0xf]
  %v63 = vld [vmem:[%s0 + $0xb4] sm:$0xf]
  %v64 = vld [vmem:[%s0 + $0xb8] sm:$0xf]
  %v65 = vld [vmem:[%s0 + $0xbc] sm:$0xf]
  %v66 = vld [vmem:[%s0 + $0xc0] sm:$0xf]
  %v67 = vld [vmem:[%s0 + $0xc4] sm:$0xf]
  %v68 = vld [vmem:[%s0 + $0xc8] sm:$0xf]
  %v69 = vld [vmem:[%s0 + $0xcc] sm:$0xf]
  %v70 = vld [vmem:[%s0 + $0xd0] sm:$0xf]
  %v71 = vld [vmem:[%s0 + $0xd4] sm:$0xf]
  %v72 = vld [vmem:[%s0 + $0xd8] sm:$0xf]
  %v73 = vld [vmem:[%s0 + $0xdc] sm:$0xf]
  %v74 = vld [vmem:[%s0 + $0xe0] sm:$0xf]
  %v75 = vld [vmem:[%s0 + $0xe4] sm:$0xf]
  %v76 = vld [vmem:[%s0 + $0xe8] sm:$0xf]
  %v77 = vld [vmem:[%s0 + $0xec] sm:$0xf]
  %v78 = vld [vmem:[%s0 + $0xf0] sm:$0xf]
  %v79 = vld [vmem:[%s0 + $0xf4] sm:$0xf]
  %v80 = vld [vmem:[%s0 + $0xf8] sm:$0xf]
  %v81 = vld [vmem:[%s0 + $0xfc] sm:$0xf]
  %vm82 = vcmask 27648
  %83 = vst.msk [vmem:[#allocation2 + $0x8] sm:$0xf] %vm82, %v18
  %84 = vst.msk [vmem:[#allocation2 + $0xc] sm:$0xf] %vm82, %v19
  %85 = vst.msk [vmem:[#allocation2 + $0x1c] sm:$0xf] %vm82, %v20
  %86 = vst.msk [vmem:[#allocation2 + $0x20] sm:$0xf] %vm82, %v21
  %87 = vst.msk [vmem:[#allocation2 + $0x30] sm:$0xf] %vm82, %v22
  %88 = vst.msk [vmem:[#allocation2 + $0x34] sm:$0xf] %vm82, %v23
  %89 = vst.msk [vmem:[#allocation2 + $0x44] sm:$0xf] %vm82, %v24
  %90 = vst.msk [vmem:[#allocation2 + $0x48] sm:$0xf] %vm82, %v25
  %91 = vst.msk [vmem:[#allocation2 + $0x58] sm:$0xf] %vm82, %v26
  %92 = vst.msk [vmem:[#allocation2 + $0x5c] sm:$0xf] %vm82, %v27
  %93 = vst.msk [vmem:[#allocation2 + $0x6c] sm:$0xf] %vm82, %v28
  %94 = vst.msk [vmem:[#allocation2 + $0x70] sm:$0xf] %vm82, %v29
  %95 = vst.msk [vmem:[#allocation2 + $0x80] sm:$0xf] %vm82, %v30
  %96 = vst.msk [vmem:[#allocation2 + $0x84] sm:$0xf] %vm82, %v31
  %97 = vst.msk [vmem:[#allocation2 + $0x94] sm:$0xf] %vm82, %v32
  %98 = vst.msk [vmem:[#allocation2 + $0x98] sm:$0xf] %vm82, %v33
  %99 = vst.msk [vmem:[#allocation2 + $0xa8] sm:$0xf] %vm82, %v34
  %100 = vst.msk [vmem:[#allocation2 + $0xac] sm:$0xf] %vm82, %v35
  %101 = vst.msk [vmem:[#allocation2 + $0xbc] sm:$0xf] %vm82, %v36
  %102 = vst.msk [vmem:[#allocation2 + $0xc0] sm:$0xf] %vm82, %v37
  %103 = vst.msk [vmem:[#allocation2 + $0xd0] sm:$0xf] %vm82, %v38
  %104 = vst.msk [vmem:[#allocation2 + $0xd4] sm:$0xf] %vm82, %v39
  %105 = vst.msk [vmem:[#allocation2 + $0xe4] sm:$0xf] %vm82, %v40
  %106 = vst.msk [vmem:[#allocation2 + $0xe8] sm:$0xf] %vm82, %v41
  %107 = vst.msk [vmem:[#allocation2 + $0xf8] sm:$0xf] %vm82, %v42
  %108 = vst.msk [vmem:[#allocation2 + $0xfc] sm:$0xf] %vm82, %v43
  %109 = vst.msk [vmem:[#allocation2 + $0x10c] sm:$0xf] %vm82, %v44
  %110 = vst.msk [vmem:[#allocation2 + $0x110] sm:$0xf] %vm82, %v45
  %111 = vst.msk [vmem:[#allocation2 + $0x120] sm:$0xf] %vm82, %v46
  %112 = vst.msk [vmem:[#allocation2 + $0x124] sm:$0xf] %vm82, %v47
  %113 = vst.msk [vmem:[#allocation2 + $0x134] sm:$0xf] %vm82, %v48
  %114 = vst.msk [vmem:[#allocation2 + $0x138] sm:$0xf] %vm82, %v49
  %115 = vst.msk [vmem:[#allocation2 + $0x148] sm:$0xf] %vm82, %v50
  %116 = vst.msk [vmem:[#allocation2 + $0x14c] sm:$0xf] %vm82, %v51
  %117 = vst.msk [vmem:[#allocation2 + $0x15c] sm:$0xf] %vm82, %v52
  %118 = vst.msk [vmem:[#allocation2 + $0x160] sm:$0xf] %vm82, %v53
  %119 = vst.msk [vmem:[#allocation2 + $0x170] sm:$0xf] %vm82, %v54
  %120 = vst.msk [vmem:[#allocation2 + $0x174] sm:$0xf] %vm82, %v55
  %121 = vst.msk [vmem:[#allocation2 + $0x184] sm:$0xf] %vm82, %v56
  %122 = vst.msk [vmem:[#allocation2 + $0x188] sm:$0xf] %vm82, %v57
  %123 = vst.msk [vmem:[#allocation2 + $0x198] sm:$0xf] %vm82, %v58
  %124 = vst.msk [vmem:[#allocation2 + $0x19c] sm:$0xf] %vm82, %v59
  %125 = vst.msk [vmem:[#allocation2 + $0x1ac] sm:$0xf] %vm82, %v60
  %126 = vst.msk [vmem:[#allocation2 + $0x1b0] sm:$0xf] %vm82, %v61
  %127 = vst.msk [vmem:[#allocation2 + $0x1c0] sm:$0xf] %vm82, %v62
  %128 = vst.msk [vmem:[#allocation2 + $0x1c4] sm:$0xf] %vm82, %v63
  %129 = vst.msk [vmem:[#allocation2 + $0x1d4] sm:$0xf] %vm82, %v64
  %130 = vst.msk [vmem:[#allocation2 + $0x1d8] sm:$0xf] %vm82, %v65
  %131 = vst.msk [vmem:[#allocation2 + $0x1e8] sm:$0xf] %vm82, %v66
  %132 = vst.msk [vmem:[#allocation2 + $0x1ec] sm:$0xf] %vm82, %v67
  %133 = vst.msk [vmem:[#allocation2 + $0x1fc] sm:$0xf] %vm82, %v68
  %134 = vst.msk [vmem:[#allocation2 + $0x200] sm:$0xf] %vm82, %v69
  %135 = vst.msk [vmem:[#allocation2 + $0x210] sm:$0xf] %vm82, %v70
  %136 = vst.msk [vmem:[#allocation2 + $0x214] sm:$0xf] %vm82, %v71
  %137 = vst.msk [vmem:[#allocation2 + $0x224] sm:$0xf] %vm82, %v72
  %138 = vst.msk [vmem:[#allocation2 + $0x228] sm:$0xf] %vm82, %v73
  %139 = vst.msk [vmem:[#allocation2 + $0x238] sm:$0xf] %vm82, %v74
  %140 = vst.msk [vmem:[#allocation2 + $0x23c] sm:$0xf] %vm82, %v75
  %141 = vst.msk [vmem:[#allocation2 + $0x24c] sm:$0xf] %vm82, %v76
  %142 = vst.msk [vmem:[#allocation2 + $0x250] sm:$0xf] %vm82, %v77
  %143 = vst.msk [vmem:[#allocation2 + $0x260] sm:$0xf] %vm82, %v78
  %144 = vst.msk [vmem:[#allocation2 + $0x264] sm:$0xf] %vm82, %v79
  %145 = vst.msk [vmem:[#allocation2 + $0x274] sm:$0xf] %vm82, %v80
  %146 = vst.msk [vmem:[#allocation2 + $0x278] sm:$0xf] %vm82, %v81
  %v147 = vld [vmem:[#allocation2 + $0x4] sm:$0xf]
  %v148 = vld [vmem:[#allocation2 + $0x8] sm:$0xf]
  %v149 = vld [vmem:[#allocation2 + $0xc] sm:$0xf]
  %v150 = vld [vmem:[#allocation2 + $0x10] sm:$0x1]
  %v151 = vld [vmem:[#allocation2 + $0x18] sm:$0xf]
  %v152 = vld [vmem:[#allocation2 + $0x1c] sm:$0xf]
  %v153 = vld [vmem:[#allocation2 + $0x20] sm:$0xf]
  %v154 = vld [vmem:[#allocation2 + $0x24] sm:$0x1]
  %v155 = vld [vmem:[#allocation2 + $0x2c] sm:$0xf]
  %v156 = vld [vmem:[#allocation2 + $0x30] sm:$0xf]
  %v157 = vld [vmem:[#allocation2 + $0x34] sm:$0xf]
  %v158 = vld [vmem:[#allocation2 + $0x38] sm:$0x1]
  %v159 = vld [vmem:[#allocation2 + $0x40] sm:$0xf]
  %v160 = vld [vmem:[#allocation2 + $0x44] sm:$0xf]
  %v161 = vld [vmem:[#allocation2 + $0x48] sm:$0xf]
  %v162 = vld [vmem:[#allocation2 + $0x4c] sm:$0x1]
  %v163 = vld [vmem:[#allocation2 + $0x54] sm:$0xf]
  %v164 = vld [vmem:[#allocation2 + $0x58] sm:$0xf]
  %v165 = vld [vmem:[#allocation2 + $0x5c] sm:$0xf]
  %v166 = vld [vmem:[#allocation2 + $0x60] sm:$0x1]
  %v167 = vld [vmem:[#allocation2 + $0x68] sm:$0xf]
  %v168 = vld [vmem:[#allocation2 + $0x6c] sm:$0xf]
  %v169 = vld [vmem:[#allocation2 + $0x70] sm:$0xf]
  %v170 = vld [vmem:[#allocation2 + $0x74] sm:$0x1]
  %v171 = vld [vmem:[#allocation2 + $0x7c] sm:$0xf]
  %v172 = vld [vmem:[#allocation2 + $0x80] sm:$0xf]
  %v173 = vld [vmem:[#allocation2 + $0x84] sm:$0xf]
  %v174 = vld [vmem:[#allocation2 + $0x88] sm:$0x1]
  %v175 = vld [vmem:[#allocation2 + $0x90] sm:$0xf]
  %v176 = vld [vmem:[#allocation2 + $0x94] sm:$0xf]
  %v177 = vld [vmem:[#allocation2 + $0x98] sm:$0xf]
  %v178 = vld [vmem:[#allocation2 + $0x9c] sm:$0x1]
  %v179 = vld [vmem:[#allocation2 + $0xa4] sm:$0xf]
  %v180 = vld [vmem:[#allocation2 + $0xa8] sm:$0xf]
  %v181 = vld [vmem:[#allocation2 + $0xac] sm:$0xf]
  %v182 = vld [vmem:[#allocation2 + $0xb0] sm:$0x1]
  %v183 = vld [vmem:[#allocation2 + $0xb8] sm:$0xf]
  %v184 = vld [vmem:[#allocation2 + $0xbc] sm:$0xf]
  %v185 = vld [vmem:[#allocation2 + $0xc0] sm:$0xf]
  %v186 = vld [vmem:[#allocation2 + $0xc4] sm:$0x1]
  %v187 = vld [vmem:[#allocation2 + $0xcc] sm:$0xf]
  %v188 = vld [vmem:[#allocation2 + $0xd0] sm:$0xf]
  %v189 = vld [vmem:[#allocation2 + $0xd4] sm:$0xf]
  %v190 = vld [vmem:[#allocation2 + $0xd8] sm:$0x1]
  %v191 = vld [vmem:[#allocation2 + $0xe0] sm:$0xf]
  %v192 = vld [vmem:[#allocation2 + $0xe4] sm:$0xf]
  %v193 = vld [vmem:[#allocation2 + $0xe8] sm:$0xf]
  %v194 = vld [vmem:[#allocation2 + $0xec] sm:$0x1]
  %v195 = vld [vmem:[#allocation2 + $0xf4] sm:$0xf]
  %v196 = vld [vmem:[#allocation2 + $0xf8] sm:$0xf]
  %v197 = vld [vmem:[#allocation2 + $0xfc] sm:$0xf]
  %v198 = vld [vmem:[#allocation2 + $0x100] sm:$0x1]
  %v199 = vld [vmem:[#allocation2 + $0x108] sm:$0xf]
  %v200 = vld [vmem:[#allocation2 + $0x10c] sm:$0xf]
  %v201 = vld [vmem:[#allocation2 + $0x110] sm:$0xf]
  %v202 = vld [vmem:[#allocation2 + $0x114] sm:$0x1]
  %v203 = vld [vmem:[#allocation2 + $0x11c] sm:$0xf]
  %v204 = vld [vmem:[#allocation2 + $0x120] sm:$0xf]
  %v205 = vld [vmem:[#allocation2 + $0x124] sm:$0xf]
  %v206 = vld [vmem:[#allocation2 + $0x128] sm:$0x1]
  %v207 = vld [vmem:[#allocation2 + $0x130] sm:$0xf]
  %v208 = vld [vmem:[#allocation2 + $0x134] sm:$0xf]
  %v209 = vld [vmem:[#allocation2 + $0x138] sm:$0xf]
  %v210 = vld [vmem:[#allocation2 + $0x13c] sm:$0x1]
  %v211 = vld [vmem:[#allocation2 + $0x144] sm:$0xf]
  %v212 = vld [vmem:[#allocation2 + $0x148] sm:$0xf]
  %v213 = vld [vmem:[#allocation2 + $0x14c] sm:$0xf]
  %v214 = vld [vmem:[#allocation2 + $0x150] sm:$0x1]
  %v215 = vld [vmem:[#allocation2 + $0x158] sm:$0xf]
  %v216 = vld [vmem:[#allocation2 + $0x15c] sm:$0xf]
  %v217 = vld [vmem:[#allocation2 + $0x160] sm:$0xf]
  %v218 = vld [vmem:[#allocation2 + $0x164] sm:$0x1]
  %v219 = vld [vmem:[#allocation2 + $0x16c] sm:$0xf]
  %v220 = vld [vmem:[#allocation2 + $0x170] sm:$0xf]
  %v221 = vld [vmem:[#allocation2 + $0x174] sm:$0xf]
  %v222 = vld [vmem:[#allocation2 + $0x178] sm:$0x1]
  %v223 = vld [vmem:[#allocation2 + $0x180] sm:$0xf]
  %v224 = vld [vmem:[#allocation2 + $0x184] sm:$0xf]
  %v225 = vld [vmem:[#allocation2 + $0x188] sm:$0xf]
  %v226 = vld [vmem:[#allocation2 + $0x18c] sm:$0x1]
  %v227 = vld [vmem:[#allocation2 + $0x194] sm:$0xf]
  %v228 = vld [vmem:[#allocation2 + $0x198] sm:$0xf]
  %v229 = vld [vmem:[#allocation2 + $0x19c] sm:$0xf]
  %v230 = vld [vmem:[#allocation2 + $0x1a0] sm:$0x1]
  %v231 = vld [vmem:[#allocation2 + $0x1a8] sm:$0xf]
  %v232 = vld [vmem:[#allocation2 + $0x1ac] sm:$0xf]
  %v233 = vld [vmem:[#allocation2 + $0x1b0] sm:$0xf]
  %v234 = vld [vmem:[#allocation2 + $0x1b4] sm:$0x1]
  %v235 = vld [vmem:[#allocation2 + $0x1bc] sm:$0xf]
  %v236 = vld [vmem:[#allocation2 + $0x1c0] sm:$0xf]
  %v237 = vld [vmem:[#allocation2 + $0x1c4] sm:$0xf]
  %v238 = vld [vmem:[#allocation2 + $0x1c8] sm:$0x1]
  %v239 = vld [vmem:[#allocation2 + $0x1d0] sm:$0xf]
  %v240 = vld [vmem:[#allocation2 + $0x1d4] sm:$0xf]
  %v241 = vld [vmem:[#allocation2 + $0x1d8] sm:$0xf]
  %v242 = vld [vmem:[#allocation2 + $0x1dc] sm:$0x1]
  %v243 = vld [vmem:[#allocation2 + $0x1e4] sm:$0xf]
  %v244 = vld [vmem:[#allocation2 + $0x1e8] sm:$0xf]
  %v245 = vld [vmem:[#allocation2 + $0x1ec] sm:$0xf]
  %v246 = vld [vmem:[#allocation2 + $0x1f0] sm:$0x1]
  %v247 = vld [vmem:[#allocation2 + $0x1f8] sm:$0xf]
  %v248 = vld [vmem:[#allocation2 + $0x1fc] sm:$0xf]
  %v249 = vld [vmem:[#allocation2 + $0x200] sm:$0xf]
  %v250 = vld [vmem:[#allocation2 + $0x204] sm:$0x1]
  %v251 = vld [vmem:[#allocation2 + $0x20c] sm:$0xf]
  %v252 = vld [vmem:[#allocation2 + $0x210] sm:$0xf]
  %v253 = vld [vmem:[#allocation2 + $0x214] sm:$0xf]
  %v254 = vld [vmem:[#allocation2 + $0x218] sm:$0x1]
  %v255 = vld [vmem:[#allocation2 + $0x220] sm:$0xf]
  %v256 = vld [vmem:[#allocation2 + $0x224] sm:$0xf]
  %v257 = vld [vmem:[#allocation2 + $0x228] sm:$0xf]
  %v258 = vld [vmem:[#allocation2 + $0x22c] sm:$0x1]
  %v259 = vld [vmem:[#allocation2 + $0x234] sm:$0xf]
  %v260 = vld [vmem:[#allocation2 + $0x238] sm:$0xf]
  %v261 = vld [vmem:[#allocation2 + $0x23c] sm:$0xf]
  %v262 = vld [vmem:[#allocation2 + $0x240] sm:$0x1]
  %v263 = vld [vmem:[#allocation2 + $0x248] sm:$0xf]
  %v264 = vld [vmem:[#allocation2 + $0x24c] sm:$0xf]
  %v265 = vld [vmem:[#allocation2 + $0x250] sm:$0xf]
  %v266 = vld [vmem:[#allocation2 + $0x254] sm:$0x1]
  %v267 = vld [vmem:[#allocation2 + $0x25c] sm:$0xf]
  %v268 = vld [vmem:[#allocation2 + $0x260] sm:$0xf]
  %v269 = vld [vmem:[#allocation2 + $0x264] sm:$0xf]
  %v270 = vld [vmem:[#allocation2 + $0x268] sm:$0x1]
  %v271 = vld [vmem:[#allocation2 + $0x270] sm:$0xf]
  %v272 = vld [vmem:[#allocation2 + $0x274] sm:$0xf]
  %v273 = vld [vmem:[#allocation2 + $0x278] sm:$0xf]
  %v274 = vld [vmem:[#allocation2 + $0x27c] sm:$0x1]
  %v275 = vlaneseq
  %v276 = vshrl.u32 %v275, 7
  %v277 = vadd.s32 %v276, 8
  %v278 = vadd.s32 %v276, 16
  %v279 = vadd.s32 %v276, 24
  %v280 = vadd.s32 %v276, 32
  %vm281 = vcmp.ge.s32.totalorder %v277, 16
  %vm282 = vcmp.ge.s32.totalorder %v278, 16
  %vm283 = vcmp.ge.s32.totalorder %v279, 16
  %vm284 = vcmp.ge.s32.totalorder %v280, 16
  %vm285 = vcmp.lt.s32.totalorder %v277, 32
  %vm286 = vcmp.lt.s32.totalorder %v278, 32
  %vm287 = vcmp.lt.s32.totalorder %v279, 32
  %vm288 = vcmp.lt.s32.totalorder %v280, 32
  %vm289 = vmand %vm281, %vm285
  %vm290 = vmand %vm282, %vm286
  %vm291 = vmand %vm283, %vm287
  %vm292 = vmand %vm284, %vm288
  %vm293 = vmpackc.low %vm289, %vm289
  %vm294 = vmpackc.low %vm290, %vm290
  %vm295 = vmpackc.low %vm291, %vm291
  %vm296 = vmpackc.low %vm292, %vm292
  %v297 = vsel %vm293, %v147, 0
  %v298 = vsel %vm294, %v148, 0
  %v299 = vsel %vm295, %v149, 0
  %v300 = vsel %vm296, %v150, 0
  %v301 = vsel %vm293, %v151, 0
  %v302 = vsel %vm294, %v152, 0
  %v303 = vsel %vm295, %v153, 0
  %v304 = vsel %vm296, %v154, 0
  %v305 = vsel %vm293, %v155, 0
  %v306 = vsel %vm294, %v156, 0
  %v307 = vsel %vm295, %v157, 0
  %v308 = vsel %vm296, %v158, 0
  %v309 = vsel %vm293, %v159, 0
  %v310 = vsel %vm294, %v160, 0
  %v311 = vsel %vm295, %v161, 0
  %v312 = vsel %vm296, %v162, 0
  %v313 = vsel %vm293, %v163, 0
  %v314 = vsel %vm294, %v164, 0
  %v315 = vsel %vm295, %v165, 0
  %v316 = vsel %vm296, %v166, 0
  %v317 = vsel %vm293, %v167, 0
  %v318 = vsel %vm294, %v168, 0
  %v319 = vsel %vm295, %v169, 0
  %v320 = vsel %vm296, %v170, 0
  %v321 = vsel %vm293, %v171, 0
  %v322 = vsel %vm294, %v172, 0
  %v323 = vsel %vm295, %v173, 0
  %v324 = vsel %vm296, %v174, 0
  %v325 = vsel %vm293, %v175, 0
  %v326 = vsel %vm294, %v176, 0
  %v327 = vsel %vm295, %v177, 0
  %v328 = vsel %vm296, %v178, 0
  %v329 = vsel %vm293, %v179, 0
  %v330 = vsel %vm294, %v180, 0
  %v331 = vsel %vm295, %v181, 0
  %v332 = vsel %vm296, %v182, 0
  %v333 = vsel %vm293, %v183, 0
  %v334 = vsel %vm294, %v184, 0
  %v335 = vsel %vm295, %v185, 0
  %v336 = vsel %vm296, %v186, 0
  %v337 = vsel %vm293, %v187, 0
  %v338 = vsel %vm294, %v188, 0
  %v339 = vsel %vm295, %v189, 0
  %v340 = vsel %vm296, %v190, 0
  %v341 = vsel %vm293, %v191, 0
  %v342 = vsel %vm294, %v192, 0
  %v343 = vsel %vm295, %v193, 0
  %v344 = vsel %vm296, %v194, 0
  %v345 = vsel %vm293, %v195, 0
  %v346 = vsel %vm294, %v196, 0
  %v347 = vsel %vm295, %v197, 0
  %v348 = vsel %vm296, %v198, 0
  %v349 = vsel %vm293, %v199, 0
  %v350 = vsel %vm294, %v200, 0
  %v351 = vsel %vm295, %v201, 0
  %v352 = vsel %vm296, %v202, 0
  %v353 = vsel %vm293, %v203, 0
  %v354 = vsel %vm294, %v204, 0
  %v355 = vsel %vm295, %v205, 0
  %v356 = vsel %vm296, %v206, 0
  %v357 = vsel %vm293, %v207, 0
  %v358 = vsel %vm294, %v208, 0
  %v359 = vsel %vm295, %v209, 0
  %v360 = vsel %vm296, %v210, 0
  %v361 = vsel %vm293, %v211, 0
  %v362 = vsel %vm294, %v212, 0
  %v363 = vsel %vm295, %v213, 0
  %v364 = vsel %vm296, %v214, 0
  %v365 = vsel %vm293, %v215, 0
  %v366 = vsel %vm294, %v216, 0
  %v367 = vsel %vm295, %v217, 0
  %v368 = vsel %vm296, %v218, 0
  %v369 = vsel %vm293, %v219, 0
  %v370 = vsel %vm294, %v220, 0
  %v371 = vsel %vm295, %v221, 0
  %v372 = vsel %vm296, %v222, 0
  %v373 = vsel %vm293, %v223, 0
  %v374 = vsel %vm294, %v224, 0
  %v375 = vsel %vm295, %v225, 0
  %v376 = vsel %vm296, %v226, 0
  %v377 = vsel %vm293, %v227, 0
  %v378 = vsel %vm294, %v228, 0
  %v379 = vsel %vm295, %v229, 0
  %v380 = vsel %vm296, %v230, 0
  %v381 = vsel %vm293, %v231, 0
  %v382 = vsel %vm294, %v232, 0
  %v383 = vsel %vm295, %v233, 0
  %v384 = vsel %vm296, %v234, 0
  %v385 = vsel %vm293, %v235, 0
  %v386 = vsel %vm294, %v236, 0
  %v387 = vsel %vm295, %v237, 0
  %v388 = vsel %vm296, %v238, 0
  %v389 = vsel %vm293, %v239, 0
  %v390 = vsel %vm294, %v240, 0
  %v391 = vsel %vm295, %v241, 0
  %v392 = vsel %vm296, %v242, 0
  %v393 = vsel %vm293, %v243, 0
  %v394 = vsel %vm294, %v244, 0
  %v395 = vsel %vm295, %v245, 0
  %v396 = vsel %vm296, %v246, 0
  %v397 = vsel %vm293, %v247, 0
  %v398 = vsel %vm294, %v248, 0
  %v399 = vsel %vm295, %v249, 0
  %v400 = vsel %vm296, %v250, 0
  %v401 = vsel %vm293, %v251, 0
  %v402 = vsel %vm294, %v252, 0
  %v403 = vsel %vm295, %v253, 0
  %v404 = vsel %vm296, %v254, 0
  %v405 = vsel %vm293, %v255, 0
  %v406 = vsel %vm294, %v256, 0
  %v407 = vsel %vm295, %v257, 0
  %v408 = vsel %vm296, %v258, 0
  %v409 = vsel %vm293, %v259, 0
  %v410 = vsel %vm294, %v260, 0
  %v411 = vsel %vm295, %v261, 0
  %v412 = vsel %vm296, %v262, 0
  %v413 = vsel %vm293, %v263, 0
  %v414 = vsel %vm294, %v264, 0
  %v415 = vsel %vm295, %v265, 0
  %v416 = vsel %vm296, %v266, 0
  %v417 = vsel %vm293, %v267, 0
  %v418 = vsel %vm294, %v268, 0
  %v419 = vsel %vm295, %v269, 0
  %v420 = vsel %vm296, %v270, 0
  %v421 = vsel %vm293, %v271, 0
  %v422 = vsel %vm294, %v272, 0
  %v423 = vsel %vm295, %v273, 0
  %v424 = vsel %vm296, %v274, 0
  %vm425 = vsmask.f32 256
  %vm426 = vsmask.f32 4368
  %vm427 = vmor %vm425, %vm426
  %v429 = vshrl.u32 %v297, 16
  %v431 = vrot.slane %v429, 7
  %v432 = vrot.slane %v431, 4
  %v434 = vshrl.u32 %v298, 16
  %v436 = vrot.slane %v434, 7
  %v437 = vshll.u32 %v298, 16
  %v439 = vor.u32 %v436, %v437
  %v440 = vsel %vm427, %v432, %v439
  %v441 = vrot.slane %v436, 4
  %v443 = vshrl.u32 %v299, 16
  %v445 = vrot.slane %v443, 7
  %v446 = vshll.u32 %v299, 16
  %v448 = vor.u32 %v445, %v446
  %v449 = vsel %vm427, %v441, %v448
  %v451 = vshrl.u32 %v301, 16
  %v453 = vrot.slane %v451, 7
  %v454 = vrot.slane %v453, 4
  %v456 = vshrl.u32 %v302, 16
  %v458 = vrot.slane %v456, 7
  %v459 = vshll.u32 %v302, 16
  %v461 = vor.u32 %v458, %v459
  %v462 = vsel %vm427, %v454, %v461
  %v463 = vrot.slane %v458, 4
  %v465 = vshrl.u32 %v303, 16
  %v467 = vrot.slane %v465, 7
  %v468 = vshll.u32 %v303, 16
  %v470 = vor.u32 %v467, %v468
  %v471 = vsel %vm427, %v463, %v470
  %v473 = vshrl.u32 %v305, 16
  %v475 = vrot.slane %v473, 7
  %v476 = vrot.slane %v475, 4
  %v478 = vshrl.u32 %v306, 16
  %v480 = vrot.slane %v478, 7
  %v481 = vshll.u32 %v306, 16
  %v483 = vor.u32 %v480, %v481
  %v484 = vsel %vm427, %v476, %v483
  %v485 = vrot.slane %v480, 4
  %v487 = vshrl.u32 %v307, 16
  %v489 = vrot.slane %v487, 7
  %v490 = vshll.u32 %v307, 16
  %v492 = vor.u32 %v489, %v490
  %v493 = vsel %vm427, %v485, %v492
  %v495 = vshrl.u32 %v309, 16
  %v497 = vrot.slane %v495, 7
  %v498 = vrot.slane %v497, 4
  %v500 = vshrl.u32 %v310, 16
  %v502 = vrot.slane %v500, 7
  %v503 = vshll.u32 %v310, 16
  %v505 = vor.u32 %v502, %v503
  %v506 = vsel %vm427, %v498, %v505
  %v507 = vrot.slane %v502, 4
  %v509 = vshrl.u32 %v311, 16
  %v511 = vrot.slane %v509, 7
  %v512 = vshll.u32 %v311, 16
  %v514 = vor.u32 %v511, %v512
  %v515 = vsel %vm427, %v507, %v514
  %v517 = vshrl.u32 %v313, 16
  %v519 = vrot.slane %v517, 7
  %v520 = vrot.slane %v519, 4
  %v522 = vshrl.u32 %v314, 16
  %v524 = vrot.slane %v522, 7
  %v525 = vshll.u32 %v314, 16
  %v527 = vor.u32 %v524, %v525
  %v528 = vsel %vm427, %v520, %v527
  %v529 = vrot.slane %v524, 4
  %v531 = vshrl.u32 %v315, 16
  %v533 = vrot.slane %v531, 7
  %v534 = vshll.u32 %v315, 16
  %v536 = vor.u32 %v533, %v534
  %v537 = vsel %vm427, %v529, %v536
  %v539 = vshrl.u32 %v317, 16
  %v541 = vrot.slane %v539, 7
  %v542 = vrot.slane %v541, 4
  %v544 = vshrl.u32 %v318, 16
  %v546 = vrot.slane %v544, 7
  %v547 = vshll.u32 %v318, 16
  %v549 = vor.u32 %v546, %v547
  %v550 = vsel %vm427, %v542, %v549
  %v551 = vrot.slane %v546, 4
  %v553 = vshrl.u32 %v319, 16
  %v555 = vrot.slane %v553, 7
  %v556 = vshll.u32 %v319, 16
  %v558 = vor.u32 %v555, %v556
  %v559 = vsel %vm427, %v551, %v558
  %v561 = vshrl.u32 %v321, 16
  %v563 = vrot.slane %v561, 7
  %v564 = vrot.slane %v563, 4
  %v566 = vshrl.u32 %v322, 16
  %v568 = vrot.slane %v566, 7
  %v569 = vshll.u32 %v322, 16
  %v571 = vor.u32 %v568, %v569
  %v572 = vsel %vm427, %v564, %v571
  %v573 = vrot.slane %v568, 4
  %v575 = vshrl.u32 %v323, 16
  %v577 = vrot.slane %v575, 7
  %v578 = vshll.u32 %v323, 16
  %v580 = vor.u32 %v577, %v578
  %v581 = vsel %vm427, %v573, %v580
  %v583 = vshrl.u32 %v325, 16
  %v585 = vrot.slane %v583, 7
  %v586 = vrot.slane %v585, 4
  %v588 = vshrl.u32 %v326, 16
  %v590 = vrot.slane %v588, 7
  %v591 = vshll.u32 %v326, 16
  %v593 = vor.u32 %v590, %v591
  %v594 = vsel %vm427, %v586, %v593
  %v595 = vrot.slane %v590, 4
  %v597 = vshrl.u32 %v327, 16
  %v599 = vrot.slane %v597, 7
  %v600 = vshll.u32 %v327, 16
  %v602 = vor.u32 %v599, %v600
  %v603 = vsel %vm427, %v595, %v602
  %v605 = vshrl.u32 %v329, 16
  %v607 = vrot.slane %v605, 7
  %v608 = vrot.slane %v607, 4
  %v610 = vshrl.u32 %v330, 16
  %v612 = vrot.slane %v610, 7
  %v613 = vshll.u32 %v330, 16
  %v615 = vor.u32 %v612, %v613
  %v616 = vsel %vm427, %v608, %v615
  %v617 = vrot.slane %v612, 4
  %v619 = vshrl.u32 %v331, 16
  %v621 = vrot.slane %v619, 7
  %v622 = vshll.u32 %v331, 16
  %v624 = vor.u32 %v621, %v622
  %v625 = vsel %vm427, %v617, %v624
  %v627 = vshrl.u32 %v333, 16
  %v629 = vrot.slane %v627, 7
  %v630 = vrot.slane %v629, 4
  %v632 = vshrl.u32 %v334, 16
  %v634 = vrot.slane %v632, 7
  %v635 = vshll.u32 %v334, 16
  %v637 = vor.u32 %v634, %v635
  %v638 = vsel %vm427, %v630, %v637
  %v639 = vrot.slane %v634, 4
  %v641 = vshrl.u32 %v335, 16
  %v643 = vrot.slane %v641, 7
  %v644 = vshll.u32 %v335, 16
  %v646 = vor.u32 %v643, %v644
  %v647 = vsel %vm427, %v639, %v646
  %v649 = vshrl.u32 %v337, 16
  %v651 = vrot.slane %v649, 7
  %v652 = vrot.slane %v651, 4
  %v654 = vshrl.u32 %v338, 16
  %v656 = vrot.slane %v654, 7
  %v657 = vshll.u32 %v338, 16
  %v659 = vor.u32 %v656, %v657
  %v660 = vsel %vm427, %v652, %v659
  %v661 = vrot.slane %v656, 4
  %v663 = vshrl.u32 %v339, 16
  %v665 = vrot.slane %v663, 7
  %v666 = vshll.u32 %v339, 16
  %v668 = vor.u32 %v665, %v666
  %v669 = vsel %vm427, %v661, %v668
  %v671 = vshrl.u32 %v341, 16
  %v673 = vrot.slane %v671, 7
  %v674 = vrot.slane %v673, 4
  %v676 = vshrl.u32 %v342, 16
  %v678 = vrot.slane %v676, 7
  %v679 = vshll.u32 %v342, 16
  %v681 = vor.u32 %v678, %v679
  %v682 = vsel %vm427, %v674, %v681
  %v683 = vrot.slane %v678, 4
  %v685 = vshrl.u32 %v343, 16
  %v687 = vrot.slane %v685, 7
  %v688 = vshll.u32 %v343, 16
  %v690 = vor.u32 %v687, %v688
  %v691 = vsel %vm427, %v683, %v690
  %v693 = vshrl.u32 %v345, 16
  %v695 = vrot.slane %v693, 7
  %v696 = vrot.slane %v695, 4
  %v698 = vshrl.u32 %v346, 16
  %v700 = vrot.slane %v698, 7
  %v701 = vshll.u32 %v346, 16
  %v703 = vor.u32 %v700, %v701
  %v704 = vsel %vm427, %v696, %v703
  %v705 = vrot.slane %v700, 4
  %v707 = vshrl.u32 %v347, 16
  %v709 = vrot.slane %v707, 7
  %v710 = vshll.u32 %v347, 16
  %v712 = vor.u32 %v709, %v710
  %v713 = vsel %vm427, %v705, %v712
  %v715 = vshrl.u32 %v349, 16
  %v717 = vrot.slane %v715, 7
  %v718 = vrot.slane %v717, 4
  %v720 = vshrl.u32 %v350, 16
  %v722 = vrot.slane %v720, 7
  %v723 = vshll.u32 %v350, 16
  %v725 = vor.u32 %v722, %v723
  %v726 = vsel %vm427, %v718, %v725
  %v727 = vrot.slane %v722, 4
  %v729 = vshrl.u32 %v351, 16
  %v731 = vrot.slane %v729, 7
  %v732 = vshll.u32 %v351, 16
  %v734 = vor.u32 %v731, %v732
  %v735 = vsel %vm427, %v727, %v734
  %v737 = vshrl.u32 %v353, 16
  %v739 = vrot.slane %v737, 7
  %v740 = vrot.slane %v739, 4
  %v742 = vshrl.u32 %v354, 16
  %v744 = vrot.slane %v742, 7
  %v745 = vshll.u32 %v354, 16
  %v747 = vor.u32 %v744, %v745
  %v748 = vsel %vm427, %v740, %v747
  %v749 = vrot.slane %v744, 4
  %v751 = vshrl.u32 %v355, 16
  %v753 = vrot.slane %v751, 7
  %v754 = vshll.u32 %v355, 16
  %v756 = vor.u32 %v753, %v754
  %v757 = vsel %vm427, %v749, %v756
  %v759 = vshrl.u32 %v357, 16
  %v761 = vrot.slane %v759, 7
  %v762 = vrot.slane %v761, 4
  %v764 = vshrl.u32 %v358, 16
  %v766 = vrot.slane %v764, 7
  %v767 = vshll.u32 %v358, 16
  %v769 = vor.u32 %v766, %v767
  %v770 = vsel %vm427, %v762, %v769
  %v771 = vrot.slane %v766, 4
  %v773 = vshrl.u32 %v359, 16
  %v775 = vrot.slane %v773, 7
  %v776 = vshll.u32 %v359, 16
  %v778 = vor.u32 %v775, %v776
  %v779 = vsel %vm427, %v771, %v778
  %v781 = vshrl.u32 %v361, 16
  %v783 = vrot.slane %v781, 7
  %v784 = vrot.slane %v783, 4
  %v786 = vshrl.u32 %v362, 16
  %v788 = vrot.slane %v786, 7
  %v789 = vshll.u32 %v362, 16
  %v791 = vor.u32 %v788, %v789
  %v792 = vsel %vm427, %v784, %v791
  %v793 = vrot.slane %v788, 4
  %v795 = vshrl.u32 %v363, 16
  %v797 = vrot.slane %v795, 7
  %v798 = vshll.u32 %v363, 16
  %v800 = vor.u32 %v797, %v798
  %v801 = vsel %vm427, %v793, %v800
  %v803 = vshrl.u32 %v365, 16
  %v805 = vrot.slane %v803, 7
  %v806 = vrot.slane %v805, 4
  %v808 = vshrl.u32 %v366, 16
  %v810 = vrot.slane %v808, 7
  %v811 = vshll.u32 %v366, 16
  %v813 = vor.u32 %v810, %v811
  %v814 = vsel %vm427, %v806, %v813
  %v815 = vrot.slane %v810, 4
  %v817 = vshrl.u32 %v367, 16
  %v819 = vrot.slane %v817, 7
  %v820 = vshll.u32 %v367, 16
  %v822 = vor.u32 %v819, %v820
  %v823 = vsel %vm427, %v815, %v822
  %v825 = vshrl.u32 %v369, 16
  %v827 = vrot.slane %v825, 7
  %v828 = vrot.slane %v827, 4
  %v830 = vshrl.u32 %v370, 16
  %v832 = vrot.slane %v830, 7
  %v833 = vshll.u32 %v370, 16
  %v835 = vor.u32 %v832, %v833
  %v836 = vsel %vm427, %v828, %v835
  %v837 = vrot.slane %v832, 4
  %v839 = vshrl.u32 %v371, 16
  %v841 = vrot.slane %v839, 7
  %v842 = vshll.u32 %v371, 16
  %v844 = vor.u32 %v841, %v842
  %v845 = vsel %vm427, %v837, %v844
  %v847 = vshrl.u32 %v373, 16
  %v849 = vrot.slane %v847, 7
  %v850 = vrot.slane %v849, 4
  %v852 = vshrl.u32 %v374, 16
  %v854 = vrot.slane %v852, 7
  %v855 = vshll.u32 %v374, 16
  %v857 = vor.u32 %v854, %v855
  %v858 = vsel %vm427, %v850, %v857
  %v859 = vrot.slane %v854, 4
  %v861 = vshrl.u32 %v375, 16
  %v863 = vrot.slane %v861, 7
  %v864 = vshll.u32 %v375, 16
  %v866 = vor.u32 %v863, %v864
  %v867 = vsel %vm427, %v859, %v866
  %v869 = vshrl.u32 %v377, 16
  %v871 = vrot.slane %v869, 7
  %v872 = vrot.slane %v871, 4
  %v874 = vshrl.u32 %v378, 16
  %v876 = vrot.slane %v874, 7
  %v877 = vshll.u32 %v378, 16
  %v879 = vor.u32 %v876, %v877
  %v880 = vsel %vm427, %v872, %v879
  %v881 = vrot.slane %v876, 4
  %v883 = vshrl.u32 %v379, 16
  %v885 = vrot.slane %v883, 7
  %v886 = vshll.u32 %v379, 16
  %v888 = vor.u32 %v885, %v886
  %v889 = vsel %vm427, %v881, %v888
  %v891 = vshrl.u32 %v381, 16
  %v893 = vrot.slane %v891, 7
  %v894 = vrot.slane %v893, 4
  %v896 = vshrl.u32 %v382, 16
  %v898 = vrot.slane %v896, 7
  %v899 = vshll.u32 %v382, 16
  %v901 = vor.u32 %v898, %v899
  %v902 = vsel %vm427, %v894, %v901
  %v903 = vrot.slane %v898, 4
  %v905 = vshrl.u32 %v383, 16
  %v907 = vrot.slane %v905, 7
  %v908 = vshll.u32 %v383, 16
  %v910 = vor.u32 %v907, %v908
  %v911 = vsel %vm427, %v903, %v910
  %v913 = vshrl.u32 %v385, 16
  %v915 = vrot.slane %v913, 7
  %v916 = vrot.slane %v915, 4
  %v918 = vshrl.u32 %v386, 16
  %v920 = vrot.slane %v918, 7
  %v921 = vshll.u32 %v386, 16
  %v923 = vor.u32 %v920, %v921
  %v924 = vsel %vm427, %v916, %v923
  %v925 = vrot.slane %v920, 4
  %v927 = vshrl.u32 %v387, 16
  %v929 = vrot.slane %v927, 7
  %v930 = vshll.u32 %v387, 16
  %v932 = vor.u32 %v929, %v930
  %v933 = vsel %vm427, %v925, %v932
  %v935 = vshrl.u32 %v389, 16
  %v937 = vrot.slane %v935, 7
  %v938 = vrot.slane %v937, 4
  %v940 = vshrl.u32 %v390, 16
  %v942 = vrot.slane %v940, 7
  %v943 = vshll.u32 %v390, 16
  %v945 = vor.u32 %v942, %v943
  %v946 = vsel %vm427, %v938, %v945
  %v947 = vrot.slane %v942, 4
  %v949 = vshrl.u32 %v391, 16
  %v951 = vrot.slane %v949, 7
  %v952 = vshll.u32 %v391, 16
  %v954 = vor.u32 %v951, %v952
  %v955 = vsel %vm427, %v947, %v954
  %v957 = vshrl.u32 %v393, 16
  %v959 = vrot.slane %v957, 7
  %v960 = vrot.slane %v959, 4
  %v962 = vshrl.u32 %v394, 16
  %v964 = vrot.slane %v962, 7
  %v965 = vshll.u32 %v394, 16
  %v967 = vor.u32 %v964, %v965
  %v968 = vsel %vm427, %v960, %v967
  %v969 = vrot.slane %v964, 4
  %v971 = vshrl.u32 %v395, 16
  %v973 = vrot.slane %v971, 7
  %v974 = vshll.u32 %v395, 16
  %v976 = vor.u32 %v973, %v974
  %v977 = vsel %vm427, %v969, %v976
  %v979 = vshrl.u32 %v397, 16
  %v981 = vrot.slane %v979, 7
  %v982 = vrot.slane %v981, 4
  %v984 = vshrl.u32 %v398, 16
  %v986 = vrot.slane %v984, 7
  %v987 = vshll.u32 %v398, 16
  %v989 = vor.u32 %v986, %v987
  %v990 = vsel %vm427, %v982, %v989
  %v991 = vrot.slane %v986, 4
  %v993 = vshrl.u32 %v399, 16
  %v995 = vrot.slane %v993, 7
  %v996 = vshll.u32 %v399, 16
  %v998 = vor.u32 %v995, %v996
  %v999 = vsel %vm427, %v991, %v998
  %v1001 = vshrl.u32 %v401, 16
  %v1003 = vrot.slane %v1001, 7
  %v1004 = vrot.slane %v1003, 4
  %v1006 = vshrl.u32 %v402, 16
  %v1008 = vrot.slane %v1006, 7
  %v1009 = vshll.u32 %v402, 16
  %v1011 = vor.u32 %v1008, %v1009
  %v1012 = vsel %vm427, %v1004, %v1011
  %v1013 = vrot.slane %v1008, 4
  %v1015 = vshrl.u32 %v403, 16
  %v1017 = vrot.slane %v1015, 7
  %v1018 = vshll.u32 %v403, 16
  %v1020 = vor.u32 %v1017, %v1018
  %v1021 = vsel %vm427, %v1013, %v1020
  %v1023 = vshrl.u32 %v405, 16
  %v1025 = vrot.slane %v1023, 7
  %v1026 = vrot.slane %v1025, 4
  %v1028 = vshrl.u32 %v406, 16
  %v1030 = vrot.slane %v1028, 7
  %v1031 = vshll.u32 %v406, 16
  %v1033 = vor.u32 %v1030, %v1031
  %v1034 = vsel %vm427, %v1026, %v1033
  %v1035 = vrot.slane %v1030, 4
  %v1037 = vshrl.u32 %v407, 16
  %v1039 = vrot.slane %v1037, 7
  %v1040 = vshll.u32 %v407, 16
  %v1042 = vor.u32 %v1039, %v1040
  %v1043 = vsel %vm427, %v1035, %v1042
  %v1045 = vshrl.u32 %v409, 16
  %v1047 = vrot.slane %v1045, 7
  %v1048 = vrot.slane %v1047, 4
  %v1050 = vshrl.u32 %v410, 16
  %v1052 = vrot.slane %v1050, 7
  %v1053 = vshll.u32 %v410, 16
  %v1055 = vor.u32 %v1052, %v1053
  %v1056 = vsel %vm427, %v1048, %v1055
  %v1057 = vrot.slane %v1052, 4
  %v1059 = vshrl.u32 %v411, 16
  %v1061 = vrot.slane %v1059, 7
  %v1062 = vshll.u32 %v411, 16
  %v1064 = vor.u32 %v1061, %v1062
  %v1065 = vsel %vm427, %v1057, %v1064
  %v1067 = vshrl.u32 %v413, 16
  %v1069 = vrot.slane %v1067, 7
  %v1070 = vrot.slane %v1069, 4
  %v1072 = vshrl.u32 %v414, 16
  %v1074 = vrot.slane %v1072, 7
  %v1075 = vshll.u32 %v414, 16
  %v1077 = vor.u32 %v1074, %v1075
  %v1078 = vsel %vm427, %v1070, %v1077
  %v1079 = vrot.slane %v1074, 4
  %v1081 = vshrl.u32 %v415, 16
  %v1083 = vrot.slane %v1081, 7
  %v1084 = vshll.u32 %v415, 16
  %v1086 = vor.u32 %v1083, %v1084
  %v1087 = vsel %vm427, %v1079, %v1086
  %v1089 = vshrl.u32 %v417, 16
  %v1091 = vrot.slane %v1089, 7
  %v1092 = vrot.slane %v1091, 4
  %v1094 = vshrl.u32 %v418, 16
  %v1096 = vrot.slane %v1094, 7
  %v1097 = vshll.u32 %v418, 16
  %v1099 = vor.u32 %v1096, %v1097
  %v1100 = vsel %vm427, %v1092, %v1099
  %v1101 = vrot.slane %v1096, 4
  %v1103 = vshrl.u32 %v419, 16
  %v1105 = vrot.slane %v1103, 7
  %v1106 = vshll.u32 %v419, 16
  %v1108 = vor.u32 %v1105, %v1106
  %v1109 = vsel %vm427, %v1101, %v1108
  %v1111 = vshrl.u32 %v421, 16
  %v1113 = vrot.slane %v1111, 7
  %v1114 = vrot.slane %v1113, 4
  %v1116 = vshrl.u32 %v422, 16
  %v1118 = vrot.slane %v1116, 7
  %v1119 = vshll.u32 %v422, 16
  %v1121 = vor.u32 %v1118, %v1119
  %v1122 = vsel %vm427, %v1114, %v1121
  %v1123 = vrot.slane %v1118, 4
  %v1125 = vshrl.u32 %v423, 16
  %v1127 = vrot.slane %v1125, 7
  %v1128 = vshll.u32 %v423, 16
  %v1130 = vor.u32 %v1127, %v1128
  %v1131 = vsel %vm427, %v1123, %v1130
  %v1132 = vld [vmem:[%s1] sm:$0x3]
  %s1133 = scalar_lea.vmem %s1, 2
  %v1134 = vld [vmem:[%s1133] sm:$0x3]
  %v1199 = vunpack.c.l.b16 %v298
  %v1200 = vunpack.c.l.b16 %v299
  %v1201 = vunpack.c.l.b16 %v302
  %v1202 = vunpack.c.l.b16 %v303
  %v1203 = vunpack.c.l.b16 %v306
  %v1204 = vunpack.c.l.b16 %v307
  %v1205 = vunpack.c.l.b16 %v310
  %v1206 = vunpack.c.l.b16 %v311
  %v1207 = vunpack.c.l.b16 %v314
  %v1208 = vunpack.c.l.b16 %v315
  %v1209 = vunpack.c.l.b16 %v318
  %v1210 = vunpack.c.l.b16 %v319
  %v1211 = vunpack.c.l.b16 %v322
  %v1212 = vunpack.c.l.b16 %v323
  %v1213 = vunpack.c.l.b16 %v326
  %v1214 = vunpack.c.l.b16 %v327
  %v1215 = vunpack.c.l.b16 %v330
  %v1216 = vunpack.c.l.b16 %v331
  %v1217 = vunpack.c.l.b16 %v334
  %v1218 = vunpack.c.l.b16 %v335
  %v1219 = vunpack.c.l.b16 %v338
  %v1220 = vunpack.c.l.b16 %v339
  %v1221 = vunpack.c.l.b16 %v342
  %v1222 = vunpack.c.l.b16 %v343
  %v1223 = vunpack.c.l.b16 %v346
  %v1224 = vunpack.c.l.b16 %v347
  %v1225 = vunpack.c.l.b16 %v350
  %v1226 = vunpack.c.l.b16 %v351
  %v1227 = vunpack.c.l.b16 %v354
  %v1228 = vunpack.c.l.b16 %v355
  %v1229 = vunpack.c.l.b16 %v358
  %v1230 = vunpack.c.l.b16 %v359
  %v1231 = vunpack.c.l.b16 %v362
  %v1232 = vunpack.c.l.b16 %v363
  %v1233 = vunpack.c.l.b16 %v366
  %v1234 = vunpack.c.l.b16 %v367
  %v1235 = vunpack.c.l.b16 %v370
  %v1236 = vunpack.c.l.b16 %v371
  %v1237 = vunpack.c.l.b16 %v374
  %v1238 = vunpack.c.l.b16 %v375
  %v1239 = vunpack.c.l.b16 %v378
  %v1240 = vunpack.c.l.b16 %v379
  %v1241 = vunpack.c.l.b16 %v382
  %v1242 = vunpack.c.l.b16 %v383
  %v1243 = vunpack.c.l.b16 %v386
  %v1244 = vunpack.c.l.b16 %v387
  %v1245 = vunpack.c.l.b16 %v390
  %v1246 = vunpack.c.l.b16 %v391
  %v1247 = vunpack.c.l.b16 %v394
  %v1248 = vunpack.c.l.b16 %v395
  %v1249 = vunpack.c.l.b16 %v398
  %v1250 = vunpack.c.l.b16 %v399
  %v1251 = vunpack.c.l.b16 %v402
  %v1252 = vunpack.c.l.b16 %v403
  %v1253 = vunpack.c.l.b16 %v406
  %v1254 = vunpack.c.l.b16 %v407
  %v1255 = vunpack.c.l.b16 %v410
  %v1256 = vunpack.c.l.b16 %v411
  %v1257 = vunpack.c.l.b16 %v414
  %v1258 = vunpack.c.l.b16 %v415
  %v1259 = vunpack.c.l.b16 %v418
  %v1260 = vunpack.c.l.b16 %v419
  %v1261 = vunpack.c.l.b16 %v422
  %v1262 = vunpack.c.l.b16 %v423
  %v1263 = vpack.c.b16 %v1200, %v1199
  %v1264 = vpack.c.b16 %v1202, %v1201
  %v1265 = vpack.c.b16 %v1204, %v1203
  %v1266 = vpack.c.b16 %v1206, %v1205
  %v1267 = vpack.c.b16 %v1208, %v1207
  %v1268 = vpack.c.b16 %v1210, %v1209
  %v1269 = vpack.c.b16 %v1212, %v1211
  %v1270 = vpack.c.b16 %v1214, %v1213
  %v1271 = vpack.c.b16 %v1216, %v1215
  %v1272 = vpack.c.b16 %v1218, %v1217
  %v1273 = vpack.c.b16 %v1220, %v1219
  %v1274 = vpack.c.b16 %v1222, %v1221
  %v1275 = vpack.c.b16 %v1224, %v1223
  %v1276 = vpack.c.b16 %v1226, %v1225
  %v1277 = vpack.c.b16 %v1228, %v1227
  %v1278 = vpack.c.b16 %v1230, %v1229
  %v1279 = vpack.c.b16 %v1232, %v1231
  %v1280 = vpack.c.b16 %v1234, %v1233
  %v1281 = vpack.c.b16 %v1236, %v1235
  %v1282 = vpack.c.b16 %v1238, %v1237
  %v1283 = vpack.c.b16 %v1240, %v1239
  %v1284 = vpack.c.b16 %v1242, %v1241
  %v1285 = vpack.c.b16 %v1244, %v1243
  %v1286 = vpack.c.b16 %v1246, %v1245
  %v1287 = vpack.c.b16 %v1248, %v1247
  %v1288 = vpack.c.b16 %v1250, %v1249
  %v1289 = vpack.c.b16 %v1252, %v1251
  %v1290 = vpack.c.b16 %v1254, %v1253
  %v1291 = vpack.c.b16 %v1256, %v1255
  %v1292 = vpack.c.b16 %v1258, %v1257
  %v1293 = vpack.c.b16 %v1260, %v1259
  %v1294 = vpack.c.b16 %v1262, %v1261
  %vm1295 = vcmask 31744
  %v1297 = vsel %vm1295, %v1263, 0
  %v1300 = vsel %vm1295, %v1264, 0
  %v1303 = vsel %vm1295, %v1265, 0
  %v1306 = vsel %vm1295, %v1266, 0
  %v1309 = vsel %vm1295, %v1267, 0
  %v1312 = vsel %vm1295, %v1268, 0
  %v1315 = vsel %vm1295, %v1269, 0
  %v1318 = vsel %vm1295, %v1270, 0
  %v1321 = vsel %vm1295, %v1271, 0
  %v1324 = vsel %vm1295, %v1272, 0
  %v1327 = vsel %vm1295, %v1273, 0
  %v1330 = vsel %vm1295, %v1274, 0
  %v1333 = vsel %vm1295, %v1275, 0
  %v1336 = vsel %vm1295, %v1276, 0
  %v1339 = vsel %vm1295, %v1277, 0
  %v1342 = vsel %vm1295, %v1278, 0
  %v1345 = vsel %vm1295, %v1279, 0
  %v1348 = vsel %vm1295, %v1280, 0
  %v1351 = vsel %vm1295, %v1281, 0
  %v1354 = vsel %vm1295, %v1282, 0
  %v1357 = vsel %vm1295, %v1283, 0
  %v1360 = vsel %vm1295, %v1284, 0
  %v1363 = vsel %vm1295, %v1285, 0
  %v1366 = vsel %vm1295, %v1286, 0
  %v1369 = vsel %vm1295, %v1287, 0
  %v1372 = vsel %vm1295, %v1288, 0
  %v1375 = vsel %vm1295, %v1289, 0
  %v1378 = vsel %vm1295, %v1290, 0
  %v1381 = vsel %vm1295, %v1291, 0
  %v1384 = vsel %vm1295, %v1292, 0
  %v1387 = vsel %vm1295, %v1293, 0
  %v1390 = vsel %vm1295, %v1294, 0
  %vm1392 = vcmask 1041408
  %v1394 = vsel %vm1392, %v1134, 0
  %1396 = vmatpush.bf16.msra.mxu0 0
  %1397 = vmatpush.bf16.msra.mxu0 0
  %1398 = vmatpush.bf16.msra.mxu0 0
  %1399 = vmatpush.bf16.msra.mxu0 0
  %1400 = vmatpush.bf16.msra.mxu0 0
  %1401 = vmatpush.bf16.msra.mxu0 0
  %1402 = vmatpush.bf16.msra.mxu0 0
  %1403 = vmatpush.bf16.msra.mxu0 %v1394
  %1404 = vmatmul.bf16.gmra.mxu0 %v1297
  %v1405 = vpop.f32.mrf.mxu0
  %v1406 = vadd.f32 0.0, %v1405
  %v1407 = vpop.f32.mrf.mxu0
  %v1408 = vadd.f32 0.0, %v1407
  %1409 = vmatmul.bf16.gmra.mxu0 %v1300
  %v1410 = vpop.f32.mrf.mxu0
  %v1411 = vadd.f32 0.0, %v1410
  %v1412 = vpop.f32.mrf.mxu0
  %v1413 = vadd.f32 0.0, %v1412
  %1414 = vmatmul.bf16.gmra.mxu0 %v1303
  %v1415 = vpop.f32.mrf.mxu0
  %v1416 = vadd.f32 0.0, %v1415
  %v1417 = vpop.f32.mrf.mxu0
  %v1418 = vadd.f32 0.0, %v1417
  %1419 = vmatmul.bf16.gmra.mxu0 %v1306
  %v1420 = vpop.f32.mrf.mxu0
  %v1421 = vadd.f32 0.0, %v1420
  %v1422 = vpop.f32.mrf.mxu0
  %v1423 = vadd.f32 0.0, %v1422
  %1424 = vmatmul.bf16.gmra.mxu0 %v1309
  %v1425 = vpop.f32.mrf.mxu0
  %v1426 = vadd.f32 0.0, %v1425
  %v1427 = vpop.f32.mrf.mxu0
  %v1428 = vadd.f32 0.0, %v1427
  %1429 = vmatmul.bf16.gmra.mxu0 %v1312
  %v1430 = vpop.f32.mrf.mxu0
  %v1431 = vadd.f32 0.0, %v1430
  %v1432 = vpop.f32.mrf.mxu0
  %v1433 = vadd.f32 0.0, %v1432
  %1434 = vmatmul.bf16.gmra.mxu0 %v1315
  %v1435 = vpop.f32.mrf.mxu0
  %v1436 = vadd.f32 0.0, %v1435
  %v1437 = vpop.f32.mrf.mxu0
  %v1438 = vadd.f32 0.0, %v1437
  %1439 = vmatmul.bf16.gmra.mxu0 %v1318
  %v1440 = vpop.f32.mrf.mxu0
  %v1441 = vadd.f32 0.0, %v1440
  %v1442 = vpop.f32.mrf.mxu0
  %v1443 = vadd.f32 0.0, %v1442
  %1444 = vmatmul.bf16.gmra.mxu0 %v1321
  %v1445 = vpop.f32.mrf.mxu0
  %v1446 = vadd.f32 0.0, %v1445
  %v1447 = vpop.f32.mrf.mxu0
  %v1448 = vadd.f32 0.0, %v1447
  %1449 = vmatmul.bf16.gmra.mxu0 %v1324
  %v1450 = vpop.f32.mrf.mxu0
  %v1451 = vadd.f32 0.0, %v1450
  %v1452 = vpop.f32.mrf.mxu0
  %v1453 = vadd.f32 0.0, %v1452
  %1454 = vmatmul.bf16.gmra.mxu0 %v1327
  %v1455 = vpop.f32.mrf.mxu0
  %v1456 = vadd.f32 0.0, %v1455
  %v1457 = vpop.f32.mrf.mxu0
  %v1458 = vadd.f32 0.0, %v1457
  %1459 = vmatmul.bf16.gmra.mxu0 %v1330
  %v1460 = vpop.f32.mrf.mxu0
  %v1461 = vadd.f32 0.0, %v1460
  %v1462 = vpop.f32.mrf.mxu0
  %v1463 = vadd.f32 0.0, %v1462
  %1464 = vmatmul.bf16.gmra.mxu0 %v1333
  %v1465 = vpop.f32.mrf.mxu0
  %v1466 = vadd.f32 0.0, %v1465
  %v1467 = vpop.f32.mrf.mxu0
  %v1468 = vadd.f32 0.0, %v1467
  %1469 = vmatmul.bf16.gmra.mxu0 %v1336
  %v1470 = vpop.f32.mrf.mxu0
  %v1471 = vadd.f32 0.0, %v1470
  %v1472 = vpop.f32.mrf.mxu0
  %v1473 = vadd.f32 0.0, %v1472
  %1474 = vmatmul.bf16.gmra.mxu0 %v1339
  %v1475 = vpop.f32.mrf.mxu0
  %v1476 = vadd.f32 0.0, %v1475
  %v1477 = vpop.f32.mrf.mxu0
  %v1478 = vadd.f32 0.0, %v1477
  %1479 = vmatmul.bf16.gmra.mxu0 %v1342
  %v1480 = vpop.f32.mrf.mxu0
  %v1481 = vadd.f32 0.0, %v1480
  %v1482 = vpop.f32.mrf.mxu0
  %v1483 = vadd.f32 0.0, %v1482
  %1484 = vmatmul.bf16.gmra.mxu0 %v1345
  %v1485 = vpop.f32.mrf.mxu0
  %v1486 = vadd.f32 0.0, %v1485
  %v1487 = vpop.f32.mrf.mxu0
  %v1488 = vadd.f32 0.0, %v1487
  %1489 = vmatmul.bf16.gmra.mxu0 %v1348
  %v1490 = vpop.f32.mrf.mxu0
  %v1491 = vadd.f32 0.0, %v1490
  %v1492 = vpop.f32.mrf.mxu0
  %v1493 = vadd.f32 0.0, %v1492
  %1494 = vmatmul.bf16.gmra.mxu0 %v1351
  %v1495 = vpop.f32.mrf.mxu0
  %v1496 = vadd.f32 0.0, %v1495
  %v1497 = vpop.f32.mrf.mxu0
  %v1498 = vadd.f32 0.0, %v1497
  %1499 = vmatmul.bf16.gmra.mxu0 %v1354
  %v1500 = vpop.f32.mrf.mxu0
  %v1501 = vadd.f32 0.0, %v1500
  %v1502 = vpop.f32.mrf.mxu0
  %v1503 = vadd.f32 0.0, %v1502
  %1504 = vmatmul.bf16.gmra.mxu0 %v1357
  %v1505 = vpop.f32.mrf.mxu0
  %v1506 = vadd.f32 0.0, %v1505
  %v1507 = vpop.f32.mrf.mxu0
  %v1508 = vadd.f32 0.0, %v1507
  %1509 = vmatmul.bf16.gmra.mxu0 %v1360
  %v1510 = vpop.f32.mrf.mxu0
  %v1511 = vadd.f32 0.0, %v1510
  %v1512 = vpop.f32.mrf.mxu0
  %v1513 = vadd.f32 0.0, %v1512
  %1514 = vmatmul.bf16.gmra.mxu0 %v1363
  %v1515 = vpop.f32.mrf.mxu0
  %v1516 = vadd.f32 0.0, %v1515
  %v1517 = vpop.f32.mrf.mxu0
  %v1518 = vadd.f32 0.0, %v1517
  %1519 = vmatmul.bf16.gmra.mxu0 %v1366
  %v1520 = vpop.f32.mrf.mxu0
  %v1521 = vadd.f32 0.0, %v1520
  %v1522 = vpop.f32.mrf.mxu0
  %v1523 = vadd.f32 0.0, %v1522
  %1524 = vmatmul.bf16.gmra.mxu0 %v1369
  %v1525 = vpop.f32.mrf.mxu0
  %v1526 = vadd.f32 0.0, %v1525
  %v1527 = vpop.f32.mrf.mxu0
  %v1528 = vadd.f32 0.0, %v1527
  %1529 = vmatmul.bf16.gmra.mxu0 %v1372
  %v1530 = vpop.f32.mrf.mxu0
  %v1531 = vadd.f32 0.0, %v1530
  %v1532 = vpop.f32.mrf.mxu0
  %v1533 = vadd.f32 0.0, %v1532
  %1534 = vmatmul.bf16.gmra.mxu0 %v1375
  %v1535 = vpop.f32.mrf.mxu0
  %v1536 = vadd.f32 0.0, %v1535
  %v1537 = vpop.f32.mrf.mxu0
  %v1538 = vadd.f32 0.0, %v1537
  %1539 = vmatmul.bf16.gmra.mxu0 %v1378
  %v1540 = vpop.f32.mrf.mxu0
  %v1541 = vadd.f32 0.0, %v1540
  %v1542 = vpop.f32.mrf.mxu0
  %v1543 = vadd.f32 0.0, %v1542
  %1544 = vmatmul.bf16.gmra.mxu0 %v1381
  %v1545 = vpop.f32.mrf.mxu0
  %v1546 = vadd.f32 0.0, %v1545
  %v1547 = vpop.f32.mrf.mxu0
  %v1548 = vadd.f32 0.0, %v1547
  %1549 = vmatmul.bf16.gmra.mxu0 %v1384
  %v1550 = vpop.f32.mrf.mxu0
  %v1551 = vadd.f32 0.0, %v1550
  %v1552 = vpop.f32.mrf.mxu0
  %v1553 = vadd.f32 0.0, %v1552
  %1554 = vmatmul.bf16.gmra.mxu0 %v1387
  %v1555 = vpop.f32.mrf.mxu0
  %v1556 = vadd.f32 0.0, %v1555
  %v1557 = vpop.f32.mrf.mxu0
  %v1558 = vadd.f32 0.0, %v1557
  %1559 = vmatmul.bf16.gmra.mxu0 %v1390
  %v1560 = vpop.f32.mrf.mxu0
  %v1561 = vadd.f32 0.0, %v1560
  %v1562 = vpop.f32.mrf.mxu0
  %v1563 = vadd.f32 0.0, %v1562
  %1564 = vdwg.mxu0
  %v1565 = vunpack.c.l.b16 %v440
  %v1566 = vunpack.c.l.b16 %v449
  %v1567 = vunpack.c.l.b16 %v462
  %v1568 = vunpack.c.l.b16 %v471
  %v1569 = vunpack.c.l.b16 %v484
  %v1570 = vunpack.c.l.b16 %v493
  %v1571 = vunpack.c.l.b16 %v506
  %v1572 = vunpack.c.l.b16 %v515
  %v1573 = vunpack.c.l.b16 %v528
  %v1574 = vunpack.c.l.b16 %v537
  %v1575 = vunpack.c.l.b16 %v550
  %v1576 = vunpack.c.l.b16 %v559
  %v1577 = vunpack.c.l.b16 %v572
  %v1578 = vunpack.c.l.b16 %v581
  %v1579 = vunpack.c.l.b16 %v594
  %v1580 = vunpack.c.l.b16 %v603
  %v1581 = vunpack.c.l.b16 %v616
  %v1582 = vunpack.c.l.b16 %v625
  %v1583 = vunpack.c.l.b16 %v638
  %v1584 = vunpack.c.l.b16 %v647
  %v1585 = vunpack.c.l.b16 %v660
  %v1586 = vunpack.c.l.b16 %v669
  %v1587 = vunpack.c.l.b16 %v682
  %v1588 = vunpack.c.l.b16 %v691
  %v1589 = vunpack.c.l.b16 %v704
  %v1590 = vunpack.c.l.b16 %v713
  %v1591 = vunpack.c.l.b16 %v726
  %v1592 = vunpack.c.l.b16 %v735
  %v1593 = vunpack.c.l.b16 %v748
  %v1594 = vunpack.c.l.b16 %v757
  %v1595 = vunpack.c.l.b16 %v770
  %v1596 = vunpack.c.l.b16 %v779
  %v1597 = vunpack.c.l.b16 %v792
  %v1598 = vunpack.c.l.b16 %v801
  %v1599 = vunpack.c.l.b16 %v814
  %v1600 = vunpack.c.l.b16 %v823
  %v1601 = vunpack.c.l.b16 %v836
  %v1602 = vunpack.c.l.b16 %v845
  %v1603 = vunpack.c.l.b16 %v858
  %v1604 = vunpack.c.l.b16 %v867
  %v1605 = vunpack.c.l.b16 %v880
  %v1606 = vunpack.c.l.b16 %v889
  %v1607 = vunpack.c.l.b16 %v902
  %v1608 = vunpack.c.l.b16 %v911
  %v1609 = vunpack.c.l.b16 %v924
  %v1610 = vunpack.c.l.b16 %v933
  %v1611 = vunpack.c.l.b16 %v946
  %v1612 = vunpack.c.l.b16 %v955
  %v1613 = vunpack.c.l.b16 %v968
  %v1614 = vunpack.c.l.b16 %v977
  %v1615 = vunpack.c.l.b16 %v990
  %v1616 = vunpack.c.l.b16 %v999
  %v1617 = vunpack.c.l.b16 %v1012
  %v1618 = vunpack.c.l.b16 %v1021
  %v1619 = vunpack.c.l.b16 %v1034
  %v1620 = vunpack.c.l.b16 %v1043
  %v1621 = vunpack.c.l.b16 %v1056
  %v1622 = vunpack.c.l.b16 %v1065
  %v1623 = vunpack.c.l.b16 %v1078
  %v1624 = vunpack.c.l.b16 %v1087
  %v1625 = vunpack.c.l.b16 %v1100
  %v1626 = vunpack.c.l.b16 %v1109
  %v1627 = vunpack.c.l.b16 %v1122
  %v1628 = vunpack.c.l.b16 %v1131
  %v1629 = vpack.c.b16 %v1566, %v1565
  %v1630 = vpack.c.b16 %v1568, %v1567
  %v1631 = vpack.c.b16 %v1570, %v1569
  %v1632 = vpack.c.b16 %v1572, %v1571
  %v1633 = vpack.c.b16 %v1574, %v1573
  %v1634 = vpack.c.b16 %v1576, %v1575
  %v1635 = vpack.c.b16 %v1578, %v1577
  %v1636 = vpack.c.b16 %v1580, %v1579
  %v1637 = vpack.c.b16 %v1582, %v1581
  %v1638 = vpack.c.b16 %v1584, %v1583
  %v1639 = vpack.c.b16 %v1586, %v1585
  %v1640 = vpack.c.b16 %v1588, %v1587
  %v1641 = vpack.c.b16 %v1590, %v1589
  %v1642 = vpack.c.b16 %v1592, %v1591
  %v1643 = vpack.c.b16 %v1594, %v1593
  %v1644 = vpack.c.b16 %v1596, %v1595
  %v1645 = vpack.c.b16 %v1598, %v1597
  %v1646 = vpack.c.b16 %v1600, %v1599
  %v1647 = vpack.c.b16 %v1602, %v1601
  %v1648 = vpack.c.b16 %v1604, %v1603
  %v1649 = vpack.c.b16 %v1606, %v1605
  %v1650 = vpack.c.b16 %v1608, %v1607
  %v1651 = vpack.c.b16 %v1610, %v1609
  %v1652 = vpack.c.b16 %v1612, %v1611
  %v1653 = vpack.c.b16 %v1614, %v1613
  %v1654 = vpack.c.b16 %v1616, %v1615
  %v1655 = vpack.c.b16 %v1618, %v1617
  %v1656 = vpack.c.b16 %v1620, %v1619
  %v1657 = vpack.c.b16 %v1622, %v1621
  %v1658 = vpack.c.b16 %v1624, %v1623
  %v1659 = vpack.c.b16 %v1626, %v1625
  %v1660 = vpack.c.b16 %v1628, %v1627
  %v1662 = vsel %vm1295, %v1629, 0
  %v1665 = vsel %vm1295, %v1630, 0
  %v1668 = vsel %vm1295, %v1631, 0
  %v1671 = vsel %vm1295, %v1632, 0
  %v1674 = vsel %vm1295, %v1633, 0
  %v1677 = vsel %vm1295, %v1634, 0
  %v1680 = vsel %vm1295, %v1635, 0
  %v1683 = vsel %vm1295, %v1636, 0
  %v1686 = vsel %vm1295, %v1637, 0
  %v1689 = vsel %vm1295, %v1638, 0
  %v1692 = vsel %vm1295, %v1639, 0
  %v1695 = vsel %vm1295, %v1640, 0
  %v1698 = vsel %vm1295, %v1641, 0
  %v1701 = vsel %vm1295, %v1642, 0
  %v1704 = vsel %vm1295, %v1643, 0
  %v1707 = vsel %vm1295, %v1644, 0
  %v1710 = vsel %vm1295, %v1645, 0
  %v1713 = vsel %vm1295, %v1646, 0
  %v1716 = vsel %vm1295, %v1647, 0
  %v1719 = vsel %vm1295, %v1648, 0
  %v1722 = vsel %vm1295, %v1649, 0
  %v1725 = vsel %vm1295, %v1650, 0
  %v1728 = vsel %vm1295, %v1651, 0
  %v1731 = vsel %vm1295, %v1652, 0
  %v1734 = vsel %vm1295, %v1653, 0
  %v1737 = vsel %vm1295, %v1654, 0
  %v1740 = vsel %vm1295, %v1655, 0
  %v1743 = vsel %vm1295, %v1656, 0
  %v1746 = vsel %vm1295, %v1657, 0
  %v1749 = vsel %vm1295, %v1658, 0
  %v1752 = vsel %vm1295, %v1659, 0
  %v1755 = vsel %vm1295, %v1660, 0
  %v1758 = vsel %vm1392, %v1132, 0
  %1760 = vmatpush.bf16.msra.mxu0 0
  %1761 = vmatpush.bf16.msra.mxu0 0
  %1762 = vmatpush.bf16.msra.mxu0 0
  %1763 = vmatpush.bf16.msra.mxu0 0
  %1764 = vmatpush.bf16.msra.mxu0 0
  %1765 = vmatpush.bf16.msra.mxu0 0
  %1766 = vmatpush.bf16.msra.mxu0 0
  %1767 = vmatpush.bf16.msra.mxu0 %v1758
  %1768 = vmatmul.bf16.gmra.mxu0 %v1662
  %v1769 = vpop.f32.mrf.mxu0
  %v1770 = vadd.f32 %v1406, %v1769
  %v1771 = vpop.f32.mrf.mxu0
  %v1772 = vadd.f32 %v1408, %v1771
  %1773 = vmatmul.bf16.gmra.mxu0 %v1665
  %v1774 = vpop.f32.mrf.mxu0
  %v1775 = vadd.f32 %v1411, %v1774
  %v1776 = vpop.f32.mrf.mxu0
  %v1777 = vadd.f32 %v1413, %v1776
  %1778 = vmatmul.bf16.gmra.mxu0 %v1668
  %v1779 = vpop.f32.mrf.mxu0
  %v1780 = vadd.f32 %v1416, %v1779
  %v1781 = vpop.f32.mrf.mxu0
  %v1782 = vadd.f32 %v1418, %v1781
  %1783 = vmatmul.bf16.gmra.mxu0 %v1671
  %v1784 = vpop.f32.mrf.mxu0
  %v1785 = vadd.f32 %v1421, %v1784
  %v1786 = vpop.f32.mrf.mxu0
  %v1787 = vadd.f32 %v1423, %v1786
  %1788 = vmatmul.bf16.gmra.mxu0 %v1674
  %v1789 = vpop.f32.mrf.mxu0
  %v1790 = vadd.f32 %v1426, %v1789
  %v1791 = vpop.f32.mrf.mxu0
  %v1792 = vadd.f32 %v1428, %v1791
  %1793 = vmatmul.bf16.gmra.mxu0 %v1677
  %v1794 = vpop.f32.mrf.mxu0
  %v1795 = vadd.f32 %v1431, %v1794
  %v1796 = vpop.f32.mrf.mxu0
  %v1797 = vadd.f32 %v1433, %v1796
  %1798 = vmatmul.bf16.gmra.mxu0 %v1680
  %v1799 = vpop.f32.mrf.mxu0
  %v1800 = vadd.f32 %v1436, %v1799
  %v1801 = vpop.f32.mrf.mxu0
  %v1802 = vadd.f32 %v1438, %v1801
  %1803 = vmatmul.bf16.gmra.mxu0 %v1683
  %v1804 = vpop.f32.mrf.mxu0
  %v1805 = vadd.f32 %v1441, %v1804
  %v1806 = vpop.f32.mrf.mxu0
  %v1807 = vadd.f32 %v1443, %v1806
  %1808 = vmatmul.bf16.gmra.mxu0 %v1686
  %v1809 = vpop.f32.mrf.mxu0
  %v1810 = vadd.f32 %v1446, %v1809
  %v1811 = vpop.f32.mrf.mxu0
  %v1812 = vadd.f32 %v1448, %v1811
  %1813 = vmatmul.bf16.gmra.mxu0 %v1689
  %v1814 = vpop.f32.mrf.mxu0
  %v1815 = vadd.f32 %v1451, %v1814
  %v1816 = vpop.f32.mrf.mxu0
  %v1817 = vadd.f32 %v1453, %v1816
  %1818 = vmatmul.bf16.gmra.mxu0 %v1692
  %v1819 = vpop.f32.mrf.mxu0
  %v1820 = vadd.f32 %v1456, %v1819
  %v1821 = vpop.f32.mrf.mxu0
  %v1822 = vadd.f32 %v1458, %v1821
  %1823 = vmatmul.bf16.gmra.mxu0 %v1695
  %v1824 = vpop.f32.mrf.mxu0
  %v1825 = vadd.f32 %v1461, %v1824
  %v1826 = vpop.f32.mrf.mxu0
  %v1827 = vadd.f32 %v1463, %v1826
  %1828 = vmatmul.bf16.gmra.mxu0 %v1698
  %v1829 = vpop.f32.mrf.mxu0
  %v1830 = vadd.f32 %v1466, %v1829
  %v1831 = vpop.f32.mrf.mxu0
  %v1832 = vadd.f32 %v1468, %v1831
  %1833 = vmatmul.bf16.gmra.mxu0 %v1701
  %v1834 = vpop.f32.mrf.mxu0
  %v1835 = vadd.f32 %v1471, %v1834
  %v1836 = vpop.f32.mrf.mxu0
  %v1837 = vadd.f32 %v1473, %v1836
  %1838 = vmatmul.bf16.gmra.mxu0 %v1704
  %v1839 = vpop.f32.mrf.mxu0
  %v1840 = vadd.f32 %v1476, %v1839
  %v1841 = vpop.f32.mrf.mxu0
  %v1842 = vadd.f32 %v1478, %v1841
  %1843 = vmatmul.bf16.gmra.mxu0 %v1707
  %v1844 = vpop.f32.mrf.mxu0
  %v1845 = vadd.f32 %v1481, %v1844
  %v1846 = vpop.f32.mrf.mxu0
  %v1847 = vadd.f32 %v1483, %v1846
  %1848 = vmatmul.bf16.gmra.mxu0 %v1710
  %v1849 = vpop.f32.mrf.mxu0
  %v1850 = vadd.f32 %v1486, %v1849
  %v1851 = vpop.f32.mrf.mxu0
  %v1852 = vadd.f32 %v1488, %v1851
  %1853 = vmatmul.bf16.gmra.mxu0 %v1713
  %v1854 = vpop.f32.mrf.mxu0
  %v1855 = vadd.f32 %v1491, %v1854
  %v1856 = vpop.f32.mrf.mxu0
  %v1857 = vadd.f32 %v1493, %v1856
  %1858 = vmatmul.bf16.gmra.mxu0 %v1716
  %v1859 = vpop.f32.mrf.mxu0
  %v1860 = vadd.f32 %v1496, %v1859
  %v1861 = vpop.f32.mrf.mxu0
  %v1862 = vadd.f32 %v1498, %v1861
  %1863 = vmatmul.bf16.gmra.mxu0 %v1719
  %v1864 = vpop.f32.mrf.mxu0
  %v1865 = vadd.f32 %v1501, %v1864
  %v1866 = vpop.f32.mrf.mxu0
  %v1867 = vadd.f32 %v1503, %v1866
  %1868 = vmatmul.bf16.gmra.mxu0 %v1722
  %v1869 = vpop.f32.mrf.mxu0
  %v1870 = vadd.f32 %v1506, %v1869
  %v1871 = vpop.f32.mrf.mxu0
  %v1872 = vadd.f32 %v1508, %v1871
  %1873 = vmatmul.bf16.gmra.mxu0 %v1725
  %v1874 = vpop.f32.mrf.mxu0
  %v1875 = vadd.f32 %v1511, %v1874
  %v1876 = vpop.f32.mrf.mxu0
  %v1877 = vadd.f32 %v1513, %v1876
  %1878 = vmatmul.bf16.gmra.mxu0 %v1728
  %v1879 = vpop.f32.mrf.mxu0
  %v1880 = vadd.f32 %v1516, %v1879
  %v1881 = vpop.f32.mrf.mxu0
  %v1882 = vadd.f32 %v1518, %v1881
  %1883 = vmatmul.bf16.gmra.mxu0 %v1731
  %v1884 = vpop.f32.mrf.mxu0
  %v1885 = vadd.f32 %v1521, %v1884
  %v1886 = vpop.f32.mrf.mxu0
  %v1887 = vadd.f32 %v1523, %v1886
  %1888 = vmatmul.bf16.gmra.mxu0 %v1734
  %v1889 = vpop.f32.mrf.mxu0
  %v1890 = vadd.f32 %v1526, %v1889
  %v1891 = vpop.f32.mrf.mxu0
  %v1892 = vadd.f32 %v1528, %v1891
  %1893 = vmatmul.bf16.gmra.mxu0 %v1737
  %v1894 = vpop.f32.mrf.mxu0
  %v1895 = vadd.f32 %v1531, %v1894
  %v1896 = vpop.f32.mrf.mxu0
  %v1897 = vadd.f32 %v1533, %v1896
  %1898 = vmatmul.bf16.gmra.mxu0 %v1740
  %v1899 = vpop.f32.mrf.mxu0
  %v1900 = vadd.f32 %v1536, %v1899
  %v1901 = vpop.f32.mrf.mxu0
  %v1902 = vadd.f32 %v1538, %v1901
  %1903 = vmatmul.bf16.gmra.mxu0 %v1743
  %v1904 = vpop.f32.mrf.mxu0
  %v1905 = vadd.f32 %v1541, %v1904
  %v1906 = vpop.f32.mrf.mxu0
  %v1907 = vadd.f32 %v1543, %v1906
  %1908 = vmatmul.bf16.gmra.mxu0 %v1746
  %v1909 = vpop.f32.mrf.mxu0
  %v1910 = vadd.f32 %v1546, %v1909
  %v1911 = vpop.f32.mrf.mxu0
  %v1912 = vadd.f32 %v1548, %v1911
  %1913 = vmatmul.bf16.gmra.mxu0 %v1749
  %v1914 = vpop.f32.mrf.mxu0
  %v1915 = vadd.f32 %v1551, %v1914
  %v1916 = vpop.f32.mrf.mxu0
  %v1917 = vadd.f32 %v1553, %v1916
  %1918 = vmatmul.bf16.gmra.mxu0 %v1752
  %v1919 = vpop.f32.mrf.mxu0
  %v1920 = vadd.f32 %v1556, %v1919
  %v1921 = vpop.f32.mrf.mxu0
  %v1922 = vadd.f32 %v1558, %v1921
  %1923 = vmatmul.bf16.gmra.mxu0 %v1755
  %v1924 = vpop.f32.mrf.mxu0
  %v1925 = vadd.f32 %v1561, %v1924
  %v1926 = vpop.f32.mrf.mxu0
  %v1927 = vadd.f32 %v1563, %v1926
  %1928 = vdwg.mxu0
  %vm1929 = vsmask.f32 3328
  %vm1930 = vsmask.f32 7440
  %vm1931 = vmor %vm1929, %vm1930
  %v1932 = vrot.slane %v434, 4
  %v1933 = vrot.slane %v437, 5
  %v1934 = vor.u32 %v1932, %v1933
  %v1935 = vrot.slane %v1934, 4
  %v1936 = vrot.slane %v446, 5
  %v1937 = vsel %vm1931, %v1935, %v1936
  %v1938 = vrot.slane %v443, 4
  %v1939 = vor.u32 %v1938, %v1936
  %v1940 = vrot.slane %v1939, 4
  %v1942 = vshll.u32 %v300, 16
  %v1944 = vrot.slane %v1942, 5
  %v1945 = vsel %vm1931, %v1940, %v1944
  %v1946 = vrot.slane %v456, 4
  %v1947 = vrot.slane %v459, 5
  %v1948 = vor.u32 %v1946, %v1947
  %v1949 = vrot.slane %v1948, 4
  %v1950 = vrot.slane %v468, 5
  %v1951 = vsel %vm1931, %v1949, %v1950
  %v1952 = vrot.slane %v465, 4
  %v1953 = vor.u32 %v1952, %v1950
  %v1954 = vrot.slane %v1953, 4
  %v1956 = vshll.u32 %v304, 16
  %v1958 = vrot.slane %v1956, 5
  %v1959 = vsel %vm1931, %v1954, %v1958
  %v1960 = vrot.slane %v478, 4
  %v1961 = vrot.slane %v481, 5
  %v1962 = vor.u32 %v1960, %v1961
  %v1963 = vrot.slane %v1962, 4
  %v1964 = vrot.slane %v490, 5
  %v1965 = vsel %vm1931, %v1963, %v1964
  %v1966 = vrot.slane %v487, 4
  %v1967 = vor.u32 %v1966, %v1964
  %v1968 = vrot.slane %v1967, 4
  %v1970 = vshll.u32 %v308, 16
  %v1972 = vrot.slane %v1970, 5
  %v1973 = vsel %vm1931, %v1968, %v1972
  %v1974 = vrot.slane %v500, 4
  %v1975 = vrot.slane %v503, 5
  %v1976 = vor.u32 %v1974, %v1975
  %v1977 = vrot.slane %v1976, 4
  %v1978 = vrot.slane %v512, 5
  %v1979 = vsel %vm1931, %v1977, %v1978
  %v1980 = vrot.slane %v509, 4
  %v1981 = vor.u32 %v1980, %v1978
  %v1982 = vrot.slane %v1981, 4
  %v1984 = vshll.u32 %v312, 16
  %v1986 = vrot.slane %v1984, 5
  %v1987 = vsel %vm1931, %v1982, %v1986
  %v1988 = vrot.slane %v522, 4
  %v1989 = vrot.slane %v525, 5
  %v1990 = vor.u32 %v1988, %v1989
  %v1991 = vrot.slane %v1990, 4
  %v1992 = vrot.slane %v534, 5
  %v1993 = vsel %vm1931, %v1991, %v1992
  %v1994 = vrot.slane %v531, 4
  %v1995 = vor.u32 %v1994, %v1992
  %v1996 = vrot.slane %v1995, 4
  %v1998 = vshll.u32 %v316, 16
  %v2000 = vrot.slane %v1998, 5
  %v2001 = vsel %vm1931, %v1996, %v2000
  %v2002 = vrot.slane %v544, 4
  %v2003 = vrot.slane %v547, 5
  %v2004 = vor.u32 %v2002, %v2003
  %v2005 = vrot.slane %v2004, 4
  %v2006 = vrot.slane %v556, 5
  %v2007 = vsel %vm1931, %v2005, %v2006
  %v2008 = vrot.slane %v553, 4
  %v2009 = vor.u32 %v2008, %v2006
  %v2010 = vrot.slane %v2009, 4
  %v2012 = vshll.u32 %v320, 16
  %v2014 = vrot.slane %v2012, 5
  %v2015 = vsel %vm1931, %v2010, %v2014
  %v2016 = vrot.slane %v566, 4
  %v2017 = vrot.slane %v569, 5
  %v2018 = vor.u32 %v2016, %v2017
  %v2019 = vrot.slane %v2018, 4
  %v2020 = vrot.slane %v578, 5
  %v2021 = vsel %vm1931, %v2019, %v2020
  %v2022 = vrot.slane %v575, 4
  %v2023 = vor.u32 %v2022, %v2020
  %v2024 = vrot.slane %v2023, 4
  %v2026 = vshll.u32 %v324, 16
  %v2028 = vrot.slane %v2026, 5
  %v2029 = vsel %vm1931, %v2024, %v2028
  %v2030 = vrot.slane %v588, 4
  %v2031 = vrot.slane %v591, 5
  %v2032 = vor.u32 %v2030, %v2031
  %v2033 = vrot.slane %v2032, 4
  %v2034 = vrot.slane %v600, 5
  %v2035 = vsel %vm1931, %v2033, %v2034
  %v2036 = vrot.slane %v597, 4
  %v2037 = vor.u32 %v2036, %v2034
  %v2038 = vrot.slane %v2037, 4
  %v2040 = vshll.u32 %v328, 16
  %v2042 = vrot.slane %v2040, 5
  %v2043 = vsel %vm1931, %v2038, %v2042
  %v2044 = vrot.slane %v610, 4
  %v2045 = vrot.slane %v613, 5
  %v2046 = vor.u32 %v2044, %v2045
  %v2047 = vrot.slane %v2046, 4
  %v2048 = vrot.slane %v622, 5
  %v2049 = vsel %vm1931, %v2047, %v2048
  %v2050 = vrot.slane %v619, 4
  %v2051 = vor.u32 %v2050, %v2048
  %v2052 = vrot.slane %v2051, 4
  %v2054 = vshll.u32 %v332, 16
  %v2056 = vrot.slane %v2054, 5
  %v2057 = vsel %vm1931, %v2052, %v2056
  %v2058 = vrot.slane %v632, 4
  %v2059 = vrot.slane %v635, 5
  %v2060 = vor.u32 %v2058, %v2059
  %v2061 = vrot.slane %v2060, 4
  %v2062 = vrot.slane %v644, 5
  %v2063 = vsel %vm1931, %v2061, %v2062
  %v2064 = vrot.slane %v641, 4
  %v2065 = vor.u32 %v2064, %v2062
  %v2066 = vrot.slane %v2065, 4
  %v2068 = vshll.u32 %v336, 16
  %v2070 = vrot.slane %v2068, 5
  %v2071 = vsel %vm1931, %v2066, %v2070
  %v2072 = vrot.slane %v654, 4
  %v2073 = vrot.slane %v657, 5
  %v2074 = vor.u32 %v2072, %v2073
  %v2075 = vrot.slane %v2074, 4
  %v2076 = vrot.slane %v666, 5
  %v2077 = vsel %vm1931, %v2075, %v2076
  %v2078 = vrot.slane %v663, 4
  %v2079 = vor.u32 %v2078, %v2076
  %v2080 = vrot.slane %v2079, 4
  %v2082 = vshll.u32 %v340, 16
  %v2084 = vrot.slane %v2082, 5
  %v2085 = vsel %vm1931, %v2080, %v2084
  %v2086 = vrot.slane %v676, 4
  %v2087 = vrot.slane %v679, 5
  %v2088 = vor.u32 %v2086, %v2087
  %v2089 = vrot.slane %v2088, 4
  %v2090 = vrot.slane %v688, 5
  %v2091 = vsel %vm1931, %v2089, %v2090
  %v2092 = vrot.slane %v685, 4
  %v2093 = vor.u32 %v2092, %v2090
  %v2094 = vrot.slane %v2093, 4
  %v2096 = vshll.u32 %v344, 16
  %v2098 = vrot.slane %v2096, 5
  %v2099 = vsel %vm1931, %v2094, %v2098
  %v2100 = vrot.slane %v698, 4
  %v2101 = vrot.slane %v701, 5
  %v2102 = vor.u32 %v2100, %v2101
  %v2103 = vrot.slane %v2102, 4
  %v2104 = vrot.slane %v710, 5
  %v2105 = vsel %vm1931, %v2103, %v2104
  %v2106 = vrot.slane %v707, 4
  %v2107 = vor.u32 %v2106, %v2104
  %v2108 = vrot.slane %v2107, 4
  %v2110 = vshll.u32 %v348, 16
  %v2112 = vrot.slane %v2110, 5
  %v2113 = vsel %vm1931, %v2108, %v2112
  %v2114 = vrot.slane %v720, 4
  %v2115 = vrot.slane %v723, 5
  %v2116 = vor.u32 %v2114, %v2115
  %v2117 = vrot.slane %v2116, 4
  %v2118 = vrot.slane %v732, 5
  %v2119 = vsel %vm1931, %v2117, %v2118
  %v2120 = vrot.slane %v729, 4
  %v2121 = vor.u32 %v2120, %v2118
  %v2122 = vrot.slane %v2121, 4
  %v2124 = vshll.u32 %v352, 16
  %v2126 = vrot.slane %v2124, 5
  %v2127 = vsel %vm1931, %v2122, %v2126
  %v2128 = vrot.slane %v742, 4
  %v2129 = vrot.slane %v745, 5
  %v2130 = vor.u32 %v2128, %v2129
  %v2131 = vrot.slane %v2130, 4
  %v2132 = vrot.slane %v754, 5
  %v2133 = vsel %vm1931, %v2131, %v2132
  %v2134 = vrot.slane %v751, 4
  %v2135 = vor.u32 %v2134, %v2132
  %v2136 = vrot.slane %v2135, 4
  %v2138 = vshll.u32 %v356, 16
  %v2140 = vrot.slane %v2138, 5
  %v2141 = vsel %vm1931, %v2136, %v2140
  %v2142 = vrot.slane %v764, 4
  %v2143 = vrot.slane %v767, 5
  %v2144 = vor.u32 %v2142, %v2143
  %v2145 = vrot.slane %v2144, 4
  %v2146 = vrot.slane %v776, 5
  %v2147 = vsel %vm1931, %v2145, %v2146
  %v2148 = vrot.slane %v773, 4
  %v2149 = vor.u32 %v2148, %v2146
  %v2150 = vrot.slane %v2149, 4
  %v2152 = vshll.u32 %v360, 16
  %v2154 = vrot.slane %v2152, 5
  %v2155 = vsel %vm1931, %v2150, %v2154
  %v2156 = vrot.slane %v786, 4
  %v2157 = vrot.slane %v789, 5
  %v2158 = vor.u32 %v2156, %v2157
  %v2159 = vrot.slane %v2158, 4
  %v2160 = vrot.slane %v798, 5
  %v2161 = vsel %vm1931, %v2159, %v2160
  %v2162 = vrot.slane %v795, 4
  %v2163 = vor.u32 %v2162, %v2160
  %v2164 = vrot.slane %v2163, 4
  %v2166 = vshll.u32 %v364, 16
  %v2168 = vrot.slane %v2166, 5
  %v2169 = vsel %vm1931, %v2164, %v2168
  %v2170 = vrot.slane %v808, 4
  %v2171 = vrot.slane %v811, 5
  %v2172 = vor.u32 %v2170, %v2171
  %v2173 = vrot.slane %v2172, 4
  %v2174 = vrot.slane %v820, 5
  %v2175 = vsel %vm1931, %v2173, %v2174
  %v2176 = vrot.slane %v817, 4
  %v2177 = vor.u32 %v2176, %v2174
  %v2178 = vrot.slane %v2177, 4
  %v2180 = vshll.u32 %v368, 16
  %v2182 = vrot.slane %v2180, 5
  %v2183 = vsel %vm1931, %v2178, %v2182
  %v2184 = vrot.slane %v830, 4
  %v2185 = vrot.slane %v833, 5
  %v2186 = vor.u32 %v2184, %v2185
  %v2187 = vrot.slane %v2186, 4
  %v2188 = vrot.slane %v842, 5
  %v2189 = vsel %vm1931, %v2187, %v2188
  %v2190 = vrot.slane %v839, 4
  %v2191 = vor.u32 %v2190, %v2188
  %v2192 = vrot.slane %v2191, 4
  %v2194 = vshll.u32 %v372, 16
  %v2196 = vrot.slane %v2194, 5
  %v2197 = vsel %vm1931, %v2192, %v2196
  %v2198 = vrot.slane %v852, 4
  %v2199 = vrot.slane %v855, 5
  %v2200 = vor.u32 %v2198, %v2199
  %v2201 = vrot.slane %v2200, 4
  %v2202 = vrot.slane %v864, 5
  %v2203 = vsel %vm1931, %v2201, %v2202
  %v2204 = vrot.slane %v861, 4
  %v2205 = vor.u32 %v2204, %v2202
  %v2206 = vrot.slane %v2205, 4
  %v2208 = vshll.u32 %v376, 16
  %v2210 = vrot.slane %v2208, 5
  %v2211 = vsel %vm1931, %v2206, %v2210
  %v2212 = vrot.slane %v874, 4
  %v2213 = vrot.slane %v877, 5
  %v2214 = vor.u32 %v2212, %v2213
  %v2215 = vrot.slane %v2214, 4
  %v2216 = vrot.slane %v886, 5
  %v2217 = vsel %vm1931, %v2215, %v2216
  %v2218 = vrot.slane %v883, 4
  %v2219 = vor.u32 %v2218, %v2216
  %v2220 = vrot.slane %v2219, 4
  %v2222 = vshll.u32 %v380, 16
  %v2224 = vrot.slane %v2222, 5
  %v2225 = vsel %vm1931, %v2220, %v2224
  %v2226 = vrot.slane %v896, 4
  %v2227 = vrot.slane %v899, 5
  %v2228 = vor.u32 %v2226, %v2227
  %v2229 = vrot.slane %v2228, 4
  %v2230 = vrot.slane %v908, 5
  %v2231 = vsel %vm1931, %v2229, %v2230
  %v2232 = vrot.slane %v905, 4
  %v2233 = vor.u32 %v2232, %v2230
  %v2234 = vrot.slane %v2233, 4
  %v2236 = vshll.u32 %v384, 16
  %v2238 = vrot.slane %v2236, 5
  %v2239 = vsel %vm1931, %v2234, %v2238
  %v2240 = vrot.slane %v918, 4
  %v2241 = vrot.slane %v921, 5
  %v2242 = vor.u32 %v2240, %v2241
  %v2243 = vrot.slane %v2242, 4
  %v2244 = vrot.slane %v930, 5
  %v2245 = vsel %vm1931, %v2243, %v2244
  %v2246 = vrot.slane %v927, 4
  %v2247 = vor.u32 %v2246, %v2244
  %v2248 = vrot.slane %v2247, 4
  %v2250 = vshll.u32 %v388, 16
  %v2252 = vrot.slane %v2250, 5
  %v2253 = vsel %vm1931, %v2248, %v2252
  %v2254 = vrot.slane %v940, 4
  %v2255 = vrot.slane %v943, 5
  %v2256 = vor.u32 %v2254, %v2255
  %v2257 = vrot.slane %v2256, 4
  %v2258 = vrot.slane %v952, 5
  %v2259 = vsel %vm1931, %v2257, %v2258
  %v2260 = vrot.slane %v949, 4
  %v2261 = vor.u32 %v2260, %v2258
  %v2262 = vrot.slane %v2261, 4
  %v2264 = vshll.u32 %v392, 16
  %v2266 = vrot.slane %v2264, 5
  %v2267 = vsel %vm1931, %v2262, %v2266
  %v2268 = vrot.slane %v962, 4
  %v2269 = vrot.slane %v965, 5
  %v2270 = vor.u32 %v2268, %v2269
  %v2271 = vrot.slane %v2270, 4
  %v2272 = vrot.slane %v974, 5
  %v2273 = vsel %vm1931, %v2271, %v2272
  %v2274 = vrot.slane %v971, 4
  %v2275 = vor.u32 %v2274, %v2272
  %v2276 = vrot.slane %v2275, 4
  %v2278 = vshll.u32 %v396, 16
  %v2280 = vrot.slane %v2278, 5
  %v2281 = vsel %vm1931, %v2276, %v2280
  %v2282 = vrot.slane %v984, 4
  %v2283 = vrot.slane %v987, 5
  %v2284 = vor.u32 %v2282, %v2283
  %v2285 = vrot.slane %v2284, 4
  %v2286 = vrot.slane %v996, 5
  %v2287 = vsel %vm1931, %v2285, %v2286
  %v2288 = vrot.slane %v993, 4
  %v2289 = vor.u32 %v2288, %v2286
  %v2290 = vrot.slane %v2289, 4
  %v2292 = vshll.u32 %v400, 16
  %v2294 = vrot.slane %v2292, 5
  %v2295 = vsel %vm1931, %v2290, %v2294
  %v2296 = vrot.slane %v1006, 4
  %v2297 = vrot.slane %v1009, 5
  %v2298 = vor.u32 %v2296, %v2297
  %v2299 = vrot.slane %v2298, 4
  %v2300 = vrot.slane %v1018, 5
  %v2301 = vsel %vm1931, %v2299, %v2300
  %v2302 = vrot.slane %v1015, 4
  %v2303 = vor.u32 %v2302, %v2300
  %v2304 = vrot.slane %v2303, 4
  %v2306 = vshll.u32 %v404, 16
  %v2308 = vrot.slane %v2306, 5
  %v2309 = vsel %vm1931, %v2304, %v2308
  %v2310 = vrot.slane %v1028, 4
  %v2311 = vrot.slane %v1031, 5
  %v2312 = vor.u32 %v2310, %v2311
  %v2313 = vrot.slane %v2312, 4
  %v2314 = vrot.slane %v1040, 5
  %v2315 = vsel %vm1931, %v2313, %v2314
  %v2316 = vrot.slane %v1037, 4
  %v2317 = vor.u32 %v2316, %v2314
  %v2318 = vrot.slane %v2317, 4
  %v2320 = vshll.u32 %v408, 16
  %v2322 = vrot.slane %v2320, 5
  %v2323 = vsel %vm1931, %v2318, %v2322
  %v2324 = vrot.slane %v1050, 4
  %v2325 = vrot.slane %v1053, 5
  %v2326 = vor.u32 %v2324, %v2325
  %v2327 = vrot.slane %v2326, 4
  %v2328 = vrot.slane %v1062, 5
  %v2329 = vsel %vm1931, %v2327, %v2328
  %v2330 = vrot.slane %v1059, 4
  %v2331 = vor.u32 %v2330, %v2328
  %v2332 = vrot.slane %v2331, 4
  %v2334 = vshll.u32 %v412, 16
  %v2336 = vrot.slane %v2334, 5
  %v2337 = vsel %vm1931, %v2332, %v2336
  %v2338 = vrot.slane %v1072, 4
  %v2339 = vrot.slane %v1075, 5
  %v2340 = vor.u32 %v2338, %v2339
  %v2341 = vrot.slane %v2340, 4
  %v2342 = vrot.slane %v1084, 5
  %v2343 = vsel %vm1931, %v2341, %v2342
  %v2344 = vrot.slane %v1081, 4
  %v2345 = vor.u32 %v2344, %v2342
  %v2346 = vrot.slane %v2345, 4
  %v2348 = vshll.u32 %v416, 16
  %v2350 = vrot.slane %v2348, 5
  %v2351 = vsel %vm1931, %v2346, %v2350
  %v2352 = vrot.slane %v1094, 4
  %v2353 = vrot.slane %v1097, 5
  %v2354 = vor.u32 %v2352, %v2353
  %v2355 = vrot.slane %v2354, 4
  %v2356 = vrot.slane %v1106, 5
  %v2357 = vsel %vm1931, %v2355, %v2356
  %v2358 = vrot.slane %v1103, 4
  %v2359 = vor.u32 %v2358, %v2356
  %v2360 = vrot.slane %v2359, 4
  %v2362 = vshll.u32 %v420, 16
  %v2364 = vrot.slane %v2362, 5
  %v2365 = vsel %vm1931, %v2360, %v2364
  %v2366 = vrot.slane %v1116, 4
  %v2367 = vrot.slane %v1119, 5
  %v2368 = vor.u32 %v2366, %v2367
  %v2369 = vrot.slane %v2368, 4
  %v2370 = vrot.slane %v1128, 5
  %v2371 = vsel %vm1931, %v2369, %v2370
  %v2372 = vrot.slane %v1125, 4
  %v2373 = vor.u32 %v2372, %v2370
  %v2374 = vrot.slane %v2373, 4
  %v2376 = vshll.u32 %v424, 16
  %v2378 = vrot.slane %v2376, 5
  %v2379 = vsel %vm1931, %v2374, %v2378
  %s2380 = scalar_lea.vmem %s1, 4
  %v2381 = vld [vmem:[%s2380] sm:$0x3]
  %v2382 = vunpack.c.l.b16 %v1937
  %v2383 = vunpack.c.l.b16 %v1945
  %v2384 = vunpack.c.l.b16 %v1951
  %v2385 = vunpack.c.l.b16 %v1959
  %v2386 = vunpack.c.l.b16 %v1965
  %v2387 = vunpack.c.l.b16 %v1973
  %v2388 = vunpack.c.l.b16 %v1979
  %v2389 = vunpack.c.l.b16 %v1987
  %v2390 = vunpack.c.l.b16 %v1993
  %v2391 = vunpack.c.l.b16 %v2001
  %v2392 = vunpack.c.l.b16 %v2007
  %v2393 = vunpack.c.l.b16 %v2015
  %v2394 = vunpack.c.l.b16 %v2021
  %v2395 = vunpack.c.l.b16 %v2029
  %v2396 = vunpack.c.l.b16 %v2035
  %v2397 = vunpack.c.l.b16 %v2043
  %v2398 = vunpack.c.l.b16 %v2049
  %v2399 = vunpack.c.l.b16 %v2057
  %v2400 = vunpack.c.l.b16 %v2063
  %v2401 = vunpack.c.l.b16 %v2071
  %v2402 = vunpack.c.l.b16 %v2077
  %v2403 = vunpack.c.l.b16 %v2085
  %v2404 = vunpack.c.l.b16 %v2091
  %v2405 = vunpack.c.l.b16 %v2099
  %v2406 = vunpack.c.l.b16 %v2105
  %v2407 = vunpack.c.l.b16 %v2113
  %v2408 = vunpack.c.l.b16 %v2119
  %v2409 = vunpack.c.l.b16 %v2127
  %v2410 = vunpack.c.l.b16 %v2133
  %v2411 = vunpack.c.l.b16 %v2141
  %v2412 = vunpack.c.l.b16 %v2147
  %v2413 = vunpack.c.l.b16 %v2155
  %v2414 = vunpack.c.l.b16 %v2161
  %v2415 = vunpack.c.l.b16 %v2169
  %v2416 = vunpack.c.l.b16 %v2175
  %v2417 = vunpack.c.l.b16 %v2183
  %v2418 = vunpack.c.l.b16 %v2189
  %v2419 = vunpack.c.l.b16 %v2197
  %v2420 = vunpack.c.l.b16 %v2203
  %v2421 = vunpack.c.l.b16 %v2211
  %v2422 = vunpack.c.l.b16 %v2217
  %v2423 = vunpack.c.l.b16 %v2225
  %v2424 = vunpack.c.l.b16 %v2231
  %v2425 = vunpack.c.l.b16 %v2239
  %v2426 = vunpack.c.l.b16 %v2245
  %v2427 = vunpack.c.l.b16 %v2253
  %v2428 = vunpack.c.l.b16 %v2259
  %v2429 = vunpack.c.l.b16 %v2267
  %v2430 = vunpack.c.l.b16 %v2273
  %v2431 = vunpack.c.l.b16 %v2281
  %v2432 = vunpack.c.l.b16 %v2287
  %v2433 = vunpack.c.l.b16 %v2295
  %v2434 = vunpack.c.l.b16 %v2301
  %v2435 = vunpack.c.l.b16 %v2309
  %v2436 = vunpack.c.l.b16 %v2315
  %v2437 = vunpack.c.l.b16 %v2323
  %v2438 = vunpack.c.l.b16 %v2329
  %v2439 = vunpack.c.l.b16 %v2337
  %v2440 = vunpack.c.l.b16 %v2343
  %v2441 = vunpack.c.l.b16 %v2351
  %v2442 = vunpack.c.l.b16 %v2357
  %v2443 = vunpack.c.l.b16 %v2365
  %v2444 = vunpack.c.l.b16 %v2371
  %v2445 = vunpack.c.l.b16 %v2379
  %v2446 = vpack.c.b16 %v2383, %v2382
  %v2447 = vpack.c.b16 %v2385, %v2384
  %v2448 = vpack.c.b16 %v2387, %v2386
  %v2449 = vpack.c.b16 %v2389, %v2388
  %v2450 = vpack.c.b16 %v2391, %v2390
  %v2451 = vpack.c.b16 %v2393, %v2392
  %v2452 = vpack.c.b16 %v2395, %v2394
  %v2453 = vpack.c.b16 %v2397, %v2396
  %v2454 = vpack.c.b16 %v2399, %v2398
  %v2455 = vpack.c.b16 %v2401, %v2400
  %v2456 = vpack.c.b16 %v2403, %v2402
  %v2457 = vpack.c.b16 %v2405, %v2404
  %v2458 = vpack.c.b16 %v2407, %v2406
  %v2459 = vpack.c.b16 %v2409, %v2408
  %v2460 = vpack.c.b16 %v2411, %v2410
  %v2461 = vpack.c.b16 %v2413, %v2412
  %v2462 = vpack.c.b16 %v2415, %v2414
  %v2463 = vpack.c.b16 %v2417, %v2416
  %v2464 = vpack.c.b16 %v2419, %v2418
  %v2465 = vpack.c.b16 %v2421, %v2420
  %v2466 = vpack.c.b16 %v2423, %v2422
  %v2467 = vpack.c.b16 %v2425, %v2424
  %v2468 = vpack.c.b16 %v2427, %v2426
  %v2469 = vpack.c.b16 %v2429, %v2428
  %v2470 = vpack.c.b16 %v2431, %v2430
  %v2471 = vpack.c.b16 %v2433, %v2432
  %v2472 = vpack.c.b16 %v2435, %v2434
  %v2473 = vpack.c.b16 %v2437, %v2436
  %v2474 = vpack.c.b16 %v2439, %v2438
  %v2475 = vpack.c.b16 %v2441, %v2440
  %v2476 = vpack.c.b16 %v2443, %v2442
  %v2477 = vpack.c.b16 %v2445, %v2444
  %v2479 = vsel %vm1295, %v2446, 0
  %v2482 = vsel %vm1295, %v2447, 0
  %v2485 = vsel %vm1295, %v2448, 0
  %v2488 = vsel %vm1295, %v2449, 0
  %v2491 = vsel %vm1295, %v2450, 0
  %v2494 = vsel %vm1295, %v2451, 0
  %v2497 = vsel %vm1295, %v2452, 0
  %v2500 = vsel %vm1295, %v2453, 0
  %v2503 = vsel %vm1295, %v2454, 0
  %v2506 = vsel %vm1295, %v2455, 0
  %v2509 = vsel %vm1295, %v2456, 0
  %v2512 = vsel %vm1295, %v2457, 0
  %v2515 = vsel %vm1295, %v2458, 0
  %v2518 = vsel %vm1295, %v2459, 0
  %v2521 = vsel %vm1295, %v2460, 0
  %v2524 = vsel %vm1295, %v2461, 0
  %v2527 = vsel %vm1295, %v2462, 0
  %v2530 = vsel %vm1295, %v2463, 0
  %v2533 = vsel %vm1295, %v2464, 0
  %v2536 = vsel %vm1295, %v2465, 0
  %v2539 = vsel %vm1295, %v2466, 0
  %v2542 = vsel %vm1295, %v2467, 0
  %v2545 = vsel %vm1295, %v2468, 0
  %v2548 = vsel %vm1295, %v2469, 0
  %v2551 = vsel %vm1295, %v2470, 0
  %v2554 = vsel %vm1295, %v2471, 0
  %v2557 = vsel %vm1295, %v2472, 0
  %v2560 = vsel %vm1295, %v2473, 0
  %v2563 = vsel %vm1295, %v2474, 0
  %v2566 = vsel %vm1295, %v2475, 0
  %v2569 = vsel %vm1295, %v2476, 0
  %v2572 = vsel %vm1295, %v2477, 0
  %v2575 = vsel %vm1392, %v2381, 0
  %2577 = vmatpush.bf16.msra.mxu0 0
  %2578 = vmatpush.bf16.msra.mxu0 0
  %2579 = vmatpush.bf16.msra.mxu0 0
  %2580 = vmatpush.bf16.msra.mxu0 0
  %2581 = vmatpush.bf16.msra.mxu0 0
  %2582 = vmatpush.bf16.msra.mxu0 0
  %2583 = vmatpush.bf16.msra.mxu0 0
  %2584 = vmatpush.bf16.msra.mxu0 %v2575
  %2585 = vmatmul.bf16.gmra.mxu0 %v2479
  %v2586 = vpop.f32.mrf.mxu0
  %v2587 = vadd.f32 0.0, %v2586
  %v2588 = vpop.f32.mrf.mxu0
  %v2589 = vadd.f32 0.0, %v2588
  %2590 = vmatmul.bf16.gmra.mxu0 %v2482
  %v2591 = vpop.f32.mrf.mxu0
  %v2592 = vadd.f32 0.0, %v2591
  %v2593 = vpop.f32.mrf.mxu0
  %v2594 = vadd.f32 0.0, %v2593
  %2595 = vmatmul.bf16.gmra.mxu0 %v2485
  %v2596 = vpop.f32.mrf.mxu0
  %v2597 = vadd.f32 0.0, %v2596
  %v2598 = vpop.f32.mrf.mxu0
  %v2599 = vadd.f32 0.0, %v2598
  %2600 = vmatmul.bf16.gmra.mxu0 %v2488
  %v2601 = vpop.f32.mrf.mxu0
  %v2602 = vadd.f32 0.0, %v2601
  %v2603 = vpop.f32.mrf.mxu0
  %v2604 = vadd.f32 0.0, %v2603
  %2605 = vmatmul.bf16.gmra.mxu0 %v2491
  %v2606 = vpop.f32.mrf.mxu0
  %v2607 = vadd.f32 0.0, %v2606
  %v2608 = vpop.f32.mrf.mxu0
  %v2609 = vadd.f32 0.0, %v2608
  %2610 = vmatmul.bf16.gmra.mxu0 %v2494
  %v2611 = vpop.f32.mrf.mxu0
  %v2612 = vadd.f32 0.0, %v2611
  %v2613 = vpop.f32.mrf.mxu0
  %v2614 = vadd.f32 0.0, %v2613
  %2615 = vmatmul.bf16.gmra.mxu0 %v2497
  %v2616 = vpop.f32.mrf.mxu0
  %v2617 = vadd.f32 0.0, %v2616
  %v2618 = vpop.f32.mrf.mxu0
  %v2619 = vadd.f32 0.0, %v2618
  %2620 = vmatmul.bf16.gmra.mxu0 %v2500
  %v2621 = vpop.f32.mrf.mxu0
  %v2622 = vadd.f32 0.0, %v2621
  %v2623 = vpop.f32.mrf.mxu0
  %v2624 = vadd.f32 0.0, %v2623
  %2625 = vmatmul.bf16.gmra.mxu0 %v2503
  %v2626 = vpop.f32.mrf.mxu0
  %v2627 = vadd.f32 0.0, %v2626
  %v2628 = vpop.f32.mrf.mxu0
  %v2629 = vadd.f32 0.0, %v2628
  %2630 = vmatmul.bf16.gmra.mxu0 %v2506
  %v2631 = vpop.f32.mrf.mxu0
  %v2632 = vadd.f32 0.0, %v2631
  %v2633 = vpop.f32.mrf.mxu0
  %v2634 = vadd.f32 0.0, %v2633
  %2635 = vmatmul.bf16.gmra.mxu0 %v2509
  %v2636 = vpop.f32.mrf.mxu0
  %v2637 = vadd.f32 0.0, %v2636
  %v2638 = vpop.f32.mrf.mxu0
  %v2639 = vadd.f32 0.0, %v2638
  %2640 = vmatmul.bf16.gmra.mxu0 %v2512
  %v2641 = vpop.f32.mrf.mxu0
  %v2642 = vadd.f32 0.0, %v2641
  %v2643 = vpop.f32.mrf.mxu0
  %v2644 = vadd.f32 0.0, %v2643
  %2645 = vmatmul.bf16.gmra.mxu0 %v2515
  %v2646 = vpop.f32.mrf.mxu0
  %v2647 = vadd.f32 0.0, %v2646
  %v2648 = vpop.f32.mrf.mxu0
  %v2649 = vadd.f32 0.0, %v2648
  %2650 = vmatmul.bf16.gmra.mxu0 %v2518
  %v2651 = vpop.f32.mrf.mxu0
  %v2652 = vadd.f32 0.0, %v2651
  %v2653 = vpop.f32.mrf.mxu0
  %v2654 = vadd.f32 0.0, %v2653
  %2655 = vmatmul.bf16.gmra.mxu0 %v2521
  %v2656 = vpop.f32.mrf.mxu0
  %v2657 = vadd.f32 0.0, %v2656
  %v2658 = vpop.f32.mrf.mxu0
  %v2659 = vadd.f32 0.0, %v2658
  %2660 = vmatmul.bf16.gmra.mxu0 %v2524
  %v2661 = vpop.f32.mrf.mxu0
  %v2662 = vadd.f32 0.0, %v2661
  %v2663 = vpop.f32.mrf.mxu0
  %v2664 = vadd.f32 0.0, %v2663
  %2665 = vmatmul.bf16.gmra.mxu0 %v2527
  %v2666 = vpop.f32.mrf.mxu0
  %v2667 = vadd.f32 0.0, %v2666
  %v2668 = vpop.f32.mrf.mxu0
  %v2669 = vadd.f32 0.0, %v2668
  %2670 = vmatmul.bf16.gmra.mxu0 %v2530
  %v2671 = vpop.f32.mrf.mxu0
  %v2672 = vadd.f32 0.0, %v2671
  %v2673 = vpop.f32.mrf.mxu0
  %v2674 = vadd.f32 0.0, %v2673
  %2675 = vmatmul.bf16.gmra.mxu0 %v2533
  %v2676 = vpop.f32.mrf.mxu0
  %v2677 = vadd.f32 0.0, %v2676
  %v2678 = vpop.f32.mrf.mxu0
  %v2679 = vadd.f32 0.0, %v2678
  %2680 = vmatmul.bf16.gmra.mxu0 %v2536
  %v2681 = vpop.f32.mrf.mxu0
  %v2682 = vadd.f32 0.0, %v2681
  %v2683 = vpop.f32.mrf.mxu0
  %v2684 = vadd.f32 0.0, %v2683
  %2685 = vmatmul.bf16.gmra.mxu0 %v2539
  %v2686 = vpop.f32.mrf.mxu0
  %v2687 = vadd.f32 0.0, %v2686
  %v2688 = vpop.f32.mrf.mxu0
  %v2689 = vadd.f32 0.0, %v2688
  %2690 = vmatmul.bf16.gmra.mxu0 %v2542
  %v2691 = vpop.f32.mrf.mxu0
  %v2692 = vadd.f32 0.0, %v2691
  %v2693 = vpop.f32.mrf.mxu0
  %v2694 = vadd.f32 0.0, %v2693
  %2695 = vmatmul.bf16.gmra.mxu0 %v2545
  %v2696 = vpop.f32.mrf.mxu0
  %v2697 = vadd.f32 0.0, %v2696
  %v2698 = vpop.f32.mrf.mxu0
  %v2699 = vadd.f32 0.0, %v2698
  %2700 = vmatmul.bf16.gmra.mxu0 %v2548
  %v2701 = vpop.f32.mrf.mxu0
  %v2702 = vadd.f32 0.0, %v2701
  %v2703 = vpop.f32.mrf.mxu0
  %v2704 = vadd.f32 0.0, %v2703
  %2705 = vmatmul.bf16.gmra.mxu0 %v2551
  %v2706 = vpop.f32.mrf.mxu0
  %v2707 = vadd.f32 0.0, %v2706
  %v2708 = vpop.f32.mrf.mxu0
  %v2709 = vadd.f32 0.0, %v2708
  %2710 = vmatmul.bf16.gmra.mxu0 %v2554
  %v2711 = vpop.f32.mrf.mxu0
  %v2712 = vadd.f32 0.0, %v2711
  %v2713 = vpop.f32.mrf.mxu0
  %v2714 = vadd.f32 0.0, %v2713
  %2715 = vmatmul.bf16.gmra.mxu0 %v2557
  %v2716 = vpop.f32.mrf.mxu0
  %v2717 = vadd.f32 0.0, %v2716
  %v2718 = vpop.f32.mrf.mxu0
  %v2719 = vadd.f32 0.0, %v2718
  %2720 = vmatmul.bf16.gmra.mxu0 %v2560
  %v2721 = vpop.f32.mrf.mxu0
  %v2722 = vadd.f32 0.0, %v2721
  %v2723 = vpop.f32.mrf.mxu0
  %v2724 = vadd.f32 0.0, %v2723
  %2725 = vmatmul.bf16.gmra.mxu0 %v2563
  %v2726 = vpop.f32.mrf.mxu0
  %v2727 = vadd.f32 0.0, %v2726
  %v2728 = vpop.f32.mrf.mxu0
  %v2729 = vadd.f32 0.0, %v2728
  %2730 = vmatmul.bf16.gmra.mxu0 %v2566
  %v2731 = vpop.f32.mrf.mxu0
  %v2732 = vadd.f32 0.0, %v2731
  %v2733 = vpop.f32.mrf.mxu0
  %v2734 = vadd.f32 0.0, %v2733
  %2735 = vmatmul.bf16.gmra.mxu0 %v2569
  %v2736 = vpop.f32.mrf.mxu0
  %v2737 = vadd.f32 0.0, %v2736
  %v2738 = vpop.f32.mrf.mxu0
  %v2739 = vadd.f32 0.0, %v2738
  %2740 = vmatmul.bf16.gmra.mxu0 %v2572
  %v2741 = vpop.f32.mrf.mxu0
  %v2742 = vadd.f32 0.0, %v2741
  %v2743 = vpop.f32.mrf.mxu0
  %v2744 = vadd.f32 0.0, %v2743
  %2745 = vdwg.mxu0
  %v2746 = vadd.f32 %v1770, %v2587
  %v2747 = vadd.f32 %v1772, %v2589
  %v2748 = vadd.f32 %v1775, %v2592
  %v2749 = vadd.f32 %v1777, %v2594
  %v2750 = vadd.f32 %v1780, %v2597
  %v2751 = vadd.f32 %v1782, %v2599
  %v2752 = vadd.f32 %v1785, %v2602
  %v2753 = vadd.f32 %v1787, %v2604
  %v2754 = vadd.f32 %v1790, %v2607
  %v2755 = vadd.f32 %v1792, %v2609
  %v2756 = vadd.f32 %v1795, %v2612
  %v2757 = vadd.f32 %v1797, %v2614
  %v2758 = vadd.f32 %v1800, %v2617
  %v2759 = vadd.f32 %v1802, %v2619
  %v2760 = vadd.f32 %v1805, %v2622
  %v2761 = vadd.f32 %v1807, %v2624
  %v2762 = vadd.f32 %v1810, %v2627
  %v2763 = vadd.f32 %v1812, %v2629
  %v2764 = vadd.f32 %v1815, %v2632
  %v2765 = vadd.f32 %v1817, %v2634
  %v2766 = vadd.f32 %v1820, %v2637
  %v2767 = vadd.f32 %v1822, %v2639
  %v2768 = vadd.f32 %v1825, %v2642
  %v2769 = vadd.f32 %v1827, %v2644
  %v2770 = vadd.f32 %v1830, %v2647
  %v2771 = vadd.f32 %v1832, %v2649
  %v2772 = vadd.f32 %v1835, %v2652
  %v2773 = vadd.f32 %v1837, %v2654
  %v2774 = vadd.f32 %v1840, %v2657
  %v2775 = vadd.f32 %v1842, %v2659
  %v2776 = vadd.f32 %v1845, %v2662
  %v2777 = vadd.f32 %v1847, %v2664
  %v2778 = vadd.f32 %v1850, %v2667
  %v2779 = vadd.f32 %v1852, %v2669
  %v2780 = vadd.f32 %v1855, %v2672
  %v2781 = vadd.f32 %v1857, %v2674
  %v2782 = vadd.f32 %v1860, %v2677
  %v2783 = vadd.f32 %v1862, %v2679
  %v2784 = vadd.f32 %v1865, %v2682
  %v2785 = vadd.f32 %v1867, %v2684
  %v2786 = vadd.f32 %v1870, %v2687
  %v2787 = vadd.f32 %v1872, %v2689
  %v2788 = vadd.f32 %v1875, %v2692
  %v2789 = vadd.f32 %v1877, %v2694
  %v2790 = vadd.f32 %v1880, %v2697
  %v2791 = vadd.f32 %v1882, %v2699
  %v2792 = vadd.f32 %v1885, %v2702
  %v2793 = vadd.f32 %v1887, %v2704
  %v2794 = vadd.f32 %v1890, %v2707
  %v2795 = vadd.f32 %v1892, %v2709
  %v2796 = vadd.f32 %v1895, %v2712
  %v2797 = vadd.f32 %v1897, %v2714
  %v2798 = vadd.f32 %v1900, %v2717
  %v2799 = vadd.f32 %v1902, %v2719
  %v2800 = vadd.f32 %v1905, %v2722
  %v2801 = vadd.f32 %v1907, %v2724
  %v2802 = vadd.f32 %v1910, %v2727
  %v2803 = vadd.f32 %v1912, %v2729
  %v2804 = vadd.f32 %v1915, %v2732
  %v2805 = vadd.f32 %v1917, %v2734
  %v2806 = vadd.f32 %v1920, %v2737
  %v2807 = vadd.f32 %v1922, %v2739
  %v2808 = vadd.f32 %v1925, %v2742
  %v2809 = vadd.f32 %v1927, %v2744
  %v2810 = vld [vmem:[%s2] sm:$0x1]
  %v2812 = vperm.slane %v2810, 0
  %v2814 = vmul.f32 %v2746, %v2812
  %v2815 = vmul.f32 %v2747, %v2812
  %v2816 = vmul.f32 %v2748, %v2812
  %v2817 = vmul.f32 %v2749, %v2812
  %v2818 = vmul.f32 %v2750, %v2812
  %v2819 = vmul.f32 %v2751, %v2812
  %v2820 = vmul.f32 %v2752, %v2812
  %v2821 = vmul.f32 %v2753, %v2812
  %v2822 = vmul.f32 %v2754, %v2812
  %v2823 = vmul.f32 %v2755, %v2812
  %v2824 = vmul.f32 %v2756, %v2812
  %v2825 = vmul.f32 %v2757, %v2812
  %v2826 = vmul.f32 %v2758, %v2812
  %v2827 = vmul.f32 %v2759, %v2812
  %v2828 = vmul.f32 %v2760, %v2812
  %v2829 = vmul.f32 %v2761, %v2812
  %v2830 = vmul.f32 %v2762, %v2812
  %v2831 = vmul.f32 %v2763, %v2812
  %v2832 = vmul.f32 %v2764, %v2812
  %v2833 = vmul.f32 %v2765, %v2812
  %v2834 = vmul.f32 %v2766, %v2812
  %v2835 = vmul.f32 %v2767, %v2812
  %v2836 = vmul.f32 %v2768, %v2812
  %v2837 = vmul.f32 %v2769, %v2812
  %v2838 = vmul.f32 %v2770, %v2812
  %v2839 = vmul.f32 %v2771, %v2812
  %v2840 = vmul.f32 %v2772, %v2812
  %v2841 = vmul.f32 %v2773, %v2812
  %v2842 = vmul.f32 %v2774, %v2812
  %v2843 = vmul.f32 %v2775, %v2812
  %v2844 = vmul.f32 %v2776, %v2812
  %v2845 = vmul.f32 %v2777, %v2812
  %v2846 = vmul.f32 %v2778, %v2812
  %v2847 = vmul.f32 %v2779, %v2812
  %v2848 = vmul.f32 %v2780, %v2812
  %v2849 = vmul.f32 %v2781, %v2812
  %v2850 = vmul.f32 %v2782, %v2812
  %v2851 = vmul.f32 %v2783, %v2812
  %v2852 = vmul.f32 %v2784, %v2812
  %v2853 = vmul.f32 %v2785, %v2812
  %v2854 = vmul.f32 %v2786, %v2812
  %v2855 = vmul.f32 %v2787, %v2812
  %v2856 = vmul.f32 %v2788, %v2812
  %v2857 = vmul.f32 %v2789, %v2812
  %v2858 = vmul.f32 %v2790, %v2812
  %v2859 = vmul.f32 %v2791, %v2812
  %v2860 = vmul.f32 %v2792, %v2812
  %v2861 = vmul.f32 %v2793, %v2812
  %v2862 = vmul.f32 %v2794, %v2812
  %v2863 = vmul.f32 %v2795, %v2812
  %v2864 = vmul.f32 %v2796, %v2812
  %v2865 = vmul.f32 %v2797, %v2812
  %v2866 = vmul.f32 %v2798, %v2812
  %v2867 = vmul.f32 %v2799, %v2812
  %v2868 = vmul.f32 %v2800, %v2812
  %v2869 = vmul.f32 %v2801, %v2812
  %v2870 = vmul.f32 %v2802, %v2812
  %v2871 = vmul.f32 %v2803, %v2812
  %v2872 = vmul.f32 %v2804, %v2812
  %v2873 = vmul.f32 %v2805, %v2812
  %v2874 = vmul.f32 %v2806, %v2812
  %v2875 = vmul.f32 %v2807, %v2812
  %v2876 = vmul.f32 %v2808, %v2812
  %v2877 = vmul.f32 %v2809, %v2812
  %v2878 = vld [vmem:[%s3] sm:$0x1]
  %v2880 = vperm.slane %v2878, 0
  %v2882 = vadd.f32 %v2814, %v2880
  %v2883 = vadd.f32 %v2815, %v2880
  %v2884 = vadd.f32 %v2816, %v2880
  %v2885 = vadd.f32 %v2817, %v2880
  %v2886 = vadd.f32 %v2818, %v2880
  %v2887 = vadd.f32 %v2819, %v2880
  %v2888 = vadd.f32 %v2820, %v2880
  %v2889 = vadd.f32 %v2821, %v2880
  %v2890 = vadd.f32 %v2822, %v2880
  %v2891 = vadd.f32 %v2823, %v2880
  %v2892 = vadd.f32 %v2824, %v2880
  %v2893 = vadd.f32 %v2825, %v2880
  %v2894 = vadd.f32 %v2826, %v2880
  %v2895 = vadd.f32 %v2827, %v2880
  %v2896 = vadd.f32 %v2828, %v2880
  %v2897 = vadd.f32 %v2829, %v2880
  %v2898 = vadd.f32 %v2830, %v2880
  %v2899 = vadd.f32 %v2831, %v2880
  %v2900 = vadd.f32 %v2832, %v2880
  %v2901 = vadd.f32 %v2833, %v2880
  %v2902 = vadd.f32 %v2834, %v2880
  %v2903 = vadd.f32 %v2835, %v2880
  %v2904 = vadd.f32 %v2836, %v2880
  %v2905 = vadd.f32 %v2837, %v2880
  %v2906 = vadd.f32 %v2838, %v2880
  %v2907 = vadd.f32 %v2839, %v2880
  %v2908 = vadd.f32 %v2840, %v2880
  %v2909 = vadd.f32 %v2841, %v2880
  %v2910 = vadd.f32 %v2842, %v2880
  %v2911 = vadd.f32 %v2843, %v2880
  %v2912 = vadd.f32 %v2844, %v2880
  %v2913 = vadd.f32 %v2845, %v2880
  %v2914 = vadd.f32 %v2846, %v2880
  %v2915 = vadd.f32 %v2847, %v2880
  %v2916 = vadd.f32 %v2848, %v2880
  %v2917 = vadd.f32 %v2849, %v2880
  %v2918 = vadd.f32 %v2850, %v2880
  %v2919 = vadd.f32 %v2851, %v2880
  %v2920 = vadd.f32 %v2852, %v2880
  %v2921 = vadd.f32 %v2853, %v2880
  %v2922 = vadd.f32 %v2854, %v2880
  %v2923 = vadd.f32 %v2855, %v2880
  %v2924 = vadd.f32 %v2856, %v2880
  %v2925 = vadd.f32 %v2857, %v2880
  %v2926 = vadd.f32 %v2858, %v2880
  %v2927 = vadd.f32 %v2859, %v2880
  %v2928 = vadd.f32 %v2860, %v2880
  %v2929 = vadd.f32 %v2861, %v2880
  %v2930 = vadd.f32 %v2862, %v2880
  %v2931 = vadd.f32 %v2863, %v2880
  %v2932 = vadd.f32 %v2864, %v2880
  %v2933 = vadd.f32 %v2865, %v2880
  %v2934 = vadd.f32 %v2866, %v2880
  %v2935 = vadd.f32 %v2867, %v2880
  %v2936 = vadd.f32 %v2868, %v2880
  %v2937 = vadd.f32 %v2869, %v2880
  %v2938 = vadd.f32 %v2870, %v2880
  %v2939 = vadd.f32 %v2871, %v2880
  %v2940 = vadd.f32 %v2872, %v2880
  %v2941 = vadd.f32 %v2873, %v2880
  %v2942 = vadd.f32 %v2874, %v2880
  %v2943 = vadd.f32 %v2875, %v2880
  %v2944 = vadd.f32 %v2876, %v2880
  %v2945 = vadd.f32 %v2877, %v2880
  %v2946 = vmul.f32 %v2882, 0.5
  %v2947 = vmul.f32 %v2883, 0.5
  %v2948 = vmul.f32 %v2884, 0.5
  %v2949 = vmul.f32 %v2885, 0.5
  %v2950 = vmul.f32 %v2886, 0.5
  %v2951 = vmul.f32 %v2887, 0.5
  %v2952 = vmul.f32 %v2888, 0.5
  %v2953 = vmul.f32 %v2889, 0.5
  %v2954 = vmul.f32 %v2890, 0.5
  %v2955 = vmul.f32 %v2891, 0.5
  %v2956 = vmul.f32 %v2892, 0.5
  %v2957 = vmul.f32 %v2893, 0.5
  %v2958 = vmul.f32 %v2894, 0.5
  %v2959 = vmul.f32 %v2895, 0.5
  %v2960 = vmul.f32 %v2896, 0.5
  %v2961 = vmul.f32 %v2897, 0.5
  %v2962 = vmul.f32 %v2898, 0.5
  %v2963 = vmul.f32 %v2899, 0.5
  %v2964 = vmul.f32 %v2900, 0.5
  %v2965 = vmul.f32 %v2901, 0.5
  %v2966 = vmul.f32 %v2902, 0.5
  %v2967 = vmul.f32 %v2903, 0.5
  %v2968 = vmul.f32 %v2904, 0.5
  %v2969 = vmul.f32 %v2905, 0.5
  %v2970 = vmul.f32 %v2906, 0.5
  %v2971 = vmul.f32 %v2907, 0.5
  %v2972 = vmul.f32 %v2908, 0.5
  %v2973 = vmul.f32 %v2909, 0.5
  %v2974 = vmul.f32 %v2910, 0.5
  %v2975 = vmul.f32 %v2911, 0.5
  %v2976 = vmul.f32 %v2912, 0.5
  %v2977 = vmul.f32 %v2913, 0.5
  %v2978 = vmul.f32 %v2914, 0.5
  %v2979 = vmul.f32 %v2915, 0.5
  %v2980 = vmul.f32 %v2916, 0.5
  %v2981 = vmul.f32 %v2917, 0.5
  %v2982 = vmul.f32 %v2918, 0.5
  %v2983 = vmul.f32 %v2919, 0.5
  %v2984 = vmul.f32 %v2920, 0.5
  %v2985 = vmul.f32 %v2921, 0.5
  %v2986 = vmul.f32 %v2922, 0.5
  %v2987 = vmul.f32 %v2923, 0.5
  %v2988 = vmul.f32 %v2924, 0.5
  %v2989 = vmul.f32 %v2925, 0.5
  %v2990 = vmul.f32 %v2926, 0.5
  %v2991 = vmul.f32 %v2927, 0.5
  %v2992 = vmul.f32 %v2928, 0.5
  %v2993 = vmul.f32 %v2929, 0.5
  %v2994 = vmul.f32 %v2930, 0.5
  %v2995 = vmul.f32 %v2931, 0.5
  %v2996 = vmul.f32 %v2932, 0.5
  %v2997 = vmul.f32 %v2933, 0.5
  %v2998 = vmul.f32 %v2934, 0.5
  %v2999 = vmul.f32 %v2935, 0.5
  %v3000 = vmul.f32 %v2936, 0.5
  %v3001 = vmul.f32 %v2937, 0.5
  %v3002 = vmul.f32 %v2938, 0.5
  %v3003 = vmul.f32 %v2939, 0.5
  %v3004 = vmul.f32 %v2940, 0.5
  %v3005 = vmul.f32 %v2941, 0.5
  %v3006 = vmul.f32 %v2942, 0.5
  %v3007 = vmul.f32 %v2943, 0.5
  %v3008 = vmul.f32 %v2944, 0.5
  %v3009 = vmul.f32 %v2945, 0.5
  %v3010 = vtanh.pop %v2946
  %v3011 = vtanh.pop %v2947
  %v3012 = vtanh.pop %v2948
  %v3013 = vtanh.pop %v2949
  %v3014 = vtanh.pop %v2950
  %v3015 = vtanh.pop %v2951
  %v3016 = vtanh.pop %v2952
  %v3017 = vtanh.pop %v2953
  %v3018 = vtanh.pop %v2954
  %v3019 = vtanh.pop %v2955
  %v3020 = vtanh.pop %v2956
  %v3021 = vtanh.pop %v2957
  %v3022 = vtanh.pop %v2958
  %v3023 = vtanh.pop %v2959
  %v3024 = vtanh.pop %v2960
  %v3025 = vtanh.pop %v2961
  %v3026 = vtanh.pop %v2962
  %v3027 = vtanh.pop %v2963
  %v3028 = vtanh.pop %v2964
  %v3029 = vtanh.pop %v2965
  %v3030 = vtanh.pop %v2966
  %v3031 = vtanh.pop %v2967
  %v3032 = vtanh.pop %v2968
  %v3033 = vtanh.pop %v2969
  %v3034 = vtanh.pop %v2970
  %v3035 = vtanh.pop %v2971
  %v3036 = vtanh.pop %v2972
  %v3037 = vtanh.pop %v2973
  %v3038 = vtanh.pop %v2974
  %v3039 = vtanh.pop %v2975
  %v3040 = vtanh.pop %v2976
  %v3041 = vtanh.pop %v2977
  %v3042 = vtanh.pop %v2978
  %v3043 = vtanh.pop %v2979
  %v3044 = vtanh.pop %v2980
  %v3045 = vtanh.pop %v2981
  %v3046 = vtanh.pop %v2982
  %v3047 = vtanh.pop %v2983
  %v3048 = vtanh.pop %v2984
  %v3049 = vtanh.pop %v2985
  %v3050 = vtanh.pop %v2986
  %v3051 = vtanh.pop %v2987
  %v3052 = vtanh.pop %v2988
  %v3053 = vtanh.pop %v2989
  %v3054 = vtanh.pop %v2990
  %v3055 = vtanh.pop %v2991
  %v3056 = vtanh.pop %v2992
  %v3057 = vtanh.pop %v2993
  %v3058 = vtanh.pop %v2994
  %v3059 = vtanh.pop %v2995
  %v3060 = vtanh.pop %v2996
  %v3061 = vtanh.pop %v2997
  %v3062 = vtanh.pop %v2998
  %v3063 = vtanh.pop %v2999
  %v3064 = vtanh.pop %v3000
  %v3065 = vtanh.pop %v3001
  %v3066 = vtanh.pop %v3002
  %v3067 = vtanh.pop %v3003
  %v3068 = vtanh.pop %v3004
  %v3069 = vtanh.pop %v3005
  %v3070 = vtanh.pop %v3006
  %v3071 = vtanh.pop %v3007
  %v3072 = vtanh.pop %v3008
  %v3073 = vtanh.pop %v3009
  %v3074 = vadd.f32 %v3010, 1.0
  %v3075 = vadd.f32 %v3011, 1.0
  %v3076 = vadd.f32 %v3012, 1.0
  %v3077 = vadd.f32 %v3013, 1.0
  %v3078 = vadd.f32 %v3014, 1.0
  %v3079 = vadd.f32 %v3015, 1.0
  %v3080 = vadd.f32 %v3016, 1.0
  %v3081 = vadd.f32 %v3017, 1.0
  %v3082 = vadd.f32 %v3018, 1.0
  %v3083 = vadd.f32 %v3019, 1.0
  %v3084 = vadd.f32 %v3020, 1.0
  %v3085 = vadd.f32 %v3021, 1.0
  %v3086 = vadd.f32 %v3022, 1.0
  %v3087 = vadd.f32 %v3023, 1.0
  %v3088 = vadd.f32 %v3024, 1.0
  %v3089 = vadd.f32 %v3025, 1.0
  %v3090 = vadd.f32 %v3026, 1.0
  %v3091 = vadd.f32 %v3027, 1.0
  %v3092 = vadd.f32 %v3028, 1.0
  %v3093 = vadd.f32 %v3029, 1.0
  %v3094 = vadd.f32 %v3030, 1.0
  %v3095 = vadd.f32 %v3031, 1.0
  %v3096 = vadd.f32 %v3032, 1.0
  %v3097 = vadd.f32 %v3033, 1.0
  %v3098 = vadd.f32 %v3034, 1.0
  %v3099 = vadd.f32 %v3035, 1.0
  %v3100 = vadd.f32 %v3036, 1.0
  %v3101 = vadd.f32 %v3037, 1.0
  %v3102 = vadd.f32 %v3038, 1.0
  %v3103 = vadd.f32 %v3039, 1.0
  %v3104 = vadd.f32 %v3040, 1.0
  %v3105 = vadd.f32 %v3041, 1.0
  %v3106 = vadd.f32 %v3042, 1.0
  %v3107 = vadd.f32 %v3043, 1.0
  %v3108 = vadd.f32 %v3044, 1.0
  %v3109 = vadd.f32 %v3045, 1.0
  %v3110 = vadd.f32 %v3046, 1.0
  %v3111 = vadd.f32 %v3047, 1.0
  %v3112 = vadd.f32 %v3048, 1.0
  %v3113 = vadd.f32 %v3049, 1.0
  %v3114 = vadd.f32 %v3050, 1.0
  %v3115 = vadd.f32 %v3051, 1.0
  %v3116 = vadd.f32 %v3052, 1.0
  %v3117 = vadd.f32 %v3053, 1.0
  %v3118 = vadd.f32 %v3054, 1.0
  %v3119 = vadd.f32 %v3055, 1.0
  %v3120 = vadd.f32 %v3056, 1.0
  %v3121 = vadd.f32 %v3057, 1.0
  %v3122 = vadd.f32 %v3058, 1.0
  %v3123 = vadd.f32 %v3059, 1.0
  %v3124 = vadd.f32 %v3060, 1.0
  %v3125 = vadd.f32 %v3061, 1.0
  %v3126 = vadd.f32 %v3062, 1.0
  %v3127 = vadd.f32 %v3063, 1.0
  %v3128 = vadd.f32 %v3064, 1.0
  %v3129 = vadd.f32 %v3065, 1.0
  %v3130 = vadd.f32 %v3066, 1.0
  %v3131 = vadd.f32 %v3067, 1.0
  %v3132 = vadd.f32 %v3068, 1.0
  %v3133 = vadd.f32 %v3069, 1.0
  %v3134 = vadd.f32 %v3070, 1.0
  %v3135 = vadd.f32 %v3071, 1.0
  %v3136 = vadd.f32 %v3072, 1.0
  %v3137 = vadd.f32 %v3073, 1.0
  %v3138 = vmul.f32 %v2946, %v3074
  %v3139 = vmul.f32 %v2947, %v3075
  %v3140 = vmul.f32 %v2948, %v3076
  %v3141 = vmul.f32 %v2949, %v3077
  %v3142 = vmul.f32 %v2950, %v3078
  %v3143 = vmul.f32 %v2951, %v3079
  %v3144 = vmul.f32 %v2952, %v3080
  %v3145 = vmul.f32 %v2953, %v3081
  %v3146 = vmul.f32 %v2954, %v3082
  %v3147 = vmul.f32 %v2955, %v3083
  %v3148 = vmul.f32 %v2956, %v3084
  %v3149 = vmul.f32 %v2957, %v3085
  %v3150 = vmul.f32 %v2958, %v3086
  %v3151 = vmul.f32 %v2959, %v3087
  %v3152 = vmul.f32 %v2960, %v3088
  %v3153 = vmul.f32 %v2961, %v3089
  %v3154 = vmul.f32 %v2962, %v3090
  %v3155 = vmul.f32 %v2963, %v3091
  %v3156 = vmul.f32 %v2964, %v3092
  %v3157 = vmul.f32 %v2965, %v3093
  %v3158 = vmul.f32 %v2966, %v3094
  %v3159 = vmul.f32 %v2967, %v3095
  %v3160 = vmul.f32 %v2968, %v3096
  %v3161 = vmul.f32 %v2969, %v3097
  %v3162 = vmul.f32 %v2970, %v3098
  %v3163 = vmul.f32 %v2971, %v3099
  %v3164 = vmul.f32 %v2972, %v3100
  %v3165 = vmul.f32 %v2973, %v3101
  %v3166 = vmul.f32 %v2974, %v3102
  %v3167 = vmul.f32 %v2975, %v3103
  %v3168 = vmul.f32 %v2976, %v3104
  %v3169 = vmul.f32 %v2977, %v3105
  %v3170 = vmul.f32 %v2978, %v3106
  %v3171 = vmul.f32 %v2979, %v3107
  %v3172 = vmul.f32 %v2980, %v3108
  %v3173 = vmul.f32 %v2981, %v3109
  %v3174 = vmul.f32 %v2982, %v3110
  %v3175 = vmul.f32 %v2983, %v3111
  %v3176 = vmul.f32 %v2984, %v3112
  %v3177 = vmul.f32 %v2985, %v3113
  %v3178 = vmul.f32 %v2986, %v3114
  %v3179 = vmul.f32 %v2987, %v3115
  %v3180 = vmul.f32 %v2988, %v3116
  %v3181 = vmul.f32 %v2989, %v3117
  %v3182 = vmul.f32 %v2990, %v3118
  %v3183 = vmul.f32 %v2991, %v3119
  %v3184 = vmul.f32 %v2992, %v3120
  %v3185 = vmul.f32 %v2993, %v3121
  %v3186 = vmul.f32 %v2994, %v3122
  %v3187 = vmul.f32 %v2995, %v3123
  %v3188 = vmul.f32 %v2996, %v3124
  %v3189 = vmul.f32 %v2997, %v3125
  %v3190 = vmul.f32 %v2998, %v3126
  %v3191 = vmul.f32 %v2999, %v3127
  %v3192 = vmul.f32 %v3000, %v3128
  %v3193 = vmul.f32 %v3001, %v3129
  %v3194 = vmul.f32 %v3002, %v3130
  %v3195 = vmul.f32 %v3003, %v3131
  %v3196 = vmul.f32 %v3004, %v3132
  %v3197 = vmul.f32 %v3005, %v3133
  %v3198 = vmul.f32 %v3006, %v3134
  %v3199 = vmul.f32 %v3007, %v3135
  %v3200 = vmul.f32 %v3008, %v3136
  %v3201 = vmul.f32 %v3009, %v3137
  %v3202 = vpack.c.bf16 %v3138, %v3138
  %v3203 = vpack.c.bf16 %v3139, %v3139
  %v3204 = vpack.c.bf16 %v3140, %v3140
  %v3205 = vpack.c.bf16 %v3141, %v3141
  %v3206 = vpack.c.bf16 %v3142, %v3142
  %v3207 = vpack.c.bf16 %v3143, %v3143
  %v3208 = vpack.c.bf16 %v3144, %v3144
  %v3209 = vpack.c.bf16 %v3145, %v3145
  %v3210 = vpack.c.bf16 %v3146, %v3146
  %v3211 = vpack.c.bf16 %v3147, %v3147
  %v3212 = vpack.c.bf16 %v3148, %v3148
  %v3213 = vpack.c.bf16 %v3149, %v3149
  %v3214 = vpack.c.bf16 %v3150, %v3150
  %v3215 = vpack.c.bf16 %v3151, %v3151
  %v3216 = vpack.c.bf16 %v3152, %v3152
  %v3217 = vpack.c.bf16 %v3153, %v3153
  %v3218 = vpack.c.bf16 %v3154, %v3154
  %v3219 = vpack.c.bf16 %v3155, %v3155
  %v3220 = vpack.c.bf16 %v3156, %v3156
  %v3221 = vpack.c.bf16 %v3157, %v3157
  %v3222 = vpack.c.bf16 %v3158, %v3158
  %v3223 = vpack.c.bf16 %v3159, %v3159
  %v3224 = vpack.c.bf16 %v3160, %v3160
  %v3225 = vpack.c.bf16 %v3161, %v3161
  %v3226 = vpack.c.bf16 %v3162, %v3162
  %v3227 = vpack.c.bf16 %v3163, %v3163
  %v3228 = vpack.c.bf16 %v3164, %v3164
  %v3229 = vpack.c.bf16 %v3165, %v3165
  %v3230 = vpack.c.bf16 %v3166, %v3166
  %v3231 = vpack.c.bf16 %v3167, %v3167
  %v3232 = vpack.c.bf16 %v3168, %v3168
  %v3233 = vpack.c.bf16 %v3169, %v3169
  %v3234 = vpack.c.bf16 %v3170, %v3170
  %v3235 = vpack.c.bf16 %v3171, %v3171
  %v3236 = vpack.c.bf16 %v3172, %v3172
  %v3237 = vpack.c.bf16 %v3173, %v3173
  %v3238 = vpack.c.bf16 %v3174, %v3174
  %v3239 = vpack.c.bf16 %v3175, %v3175
  %v3240 = vpack.c.bf16 %v3176, %v3176
  %v3241 = vpack.c.bf16 %v3177, %v3177
  %v3242 = vpack.c.bf16 %v3178, %v3178
  %v3243 = vpack.c.bf16 %v3179, %v3179
  %v3244 = vpack.c.bf16 %v3180, %v3180
  %v3245 = vpack.c.bf16 %v3181, %v3181
  %v3246 = vpack.c.bf16 %v3182, %v3182
  %v3247 = vpack.c.bf16 %v3183, %v3183
  %v3248 = vpack.c.bf16 %v3184, %v3184
  %v3249 = vpack.c.bf16 %v3185, %v3185
  %v3250 = vpack.c.bf16 %v3186, %v3186
  %v3251 = vpack.c.bf16 %v3187, %v3187
  %v3252 = vpack.c.bf16 %v3188, %v3188
  %v3253 = vpack.c.bf16 %v3189, %v3189
  %v3254 = vpack.c.bf16 %v3190, %v3190
  %v3255 = vpack.c.bf16 %v3191, %v3191
  %v3256 = vpack.c.bf16 %v3192, %v3192
  %v3257 = vpack.c.bf16 %v3193, %v3193
  %v3258 = vpack.c.bf16 %v3194, %v3194
  %v3259 = vpack.c.bf16 %v3195, %v3195
  %v3260 = vpack.c.bf16 %v3196, %v3196
  %v3261 = vpack.c.bf16 %v3197, %v3197
  %v3262 = vpack.c.bf16 %v3198, %v3198
  %v3263 = vpack.c.bf16 %v3199, %v3199
  %v3264 = vpack.c.bf16 %v3200, %v3200
  %v3265 = vpack.c.bf16 %v3201, %v3201
  %vm3266 = vcmask 60416
  %3267 = vst.msk [vmem:[%s4] sm:$0xf] %vm3266, %v3202
  %3268 = vst.msk [vmem:[%s4 + $0x4] sm:$0xf] %vm3266, %v3203
  %3269 = vst.msk [vmem:[%s4 + $0x8] sm:$0xf] %vm3266, %v3204
  %3270 = vst.msk [vmem:[%s4 + $0xc] sm:$0xf] %vm3266, %v3205
  %3271 = vst.msk [vmem:[%s4 + $0x10] sm:$0xf] %vm3266, %v3206
  %3272 = vst.msk [vmem:[%s4 + $0x14] sm:$0xf] %vm3266, %v3207
  %3273 = vst.msk [vmem:[%s4 + $0x18] sm:$0xf] %vm3266, %v3208
  %3274 = vst.msk [vmem:[%s4 + $0x1c] sm:$0xf] %vm3266, %v3209
  %3275 = vst.msk [vmem:[%s4 + $0x20] sm:$0xf] %vm3266, %v3210
  %3276 = vst.msk [vmem:[%s4 + $0x24] sm:$0xf] %vm3266, %v3211
  %3277 = vst.msk [vmem:[%s4 + $0x28] sm:$0xf] %vm3266, %v3212
  %3278 = vst.msk [vmem:[%s4 + $0x2c] sm:$0xf] %vm3266, %v3213
  %3279 = vst.msk [vmem:[%s4 + $0x30] sm:$0xf] %vm3266, %v3214
  %3280 = vst.msk [vmem:[%s4 + $0x34] sm:$0xf] %vm3266, %v3215
  %3281 = vst.msk [vmem:[%s4 + $0x38] sm:$0xf] %vm3266, %v3216
  %3282 = vst.msk [vmem:[%s4 + $0x3c] sm:$0xf] %vm3266, %v3217
  %3283 = vst.msk [vmem:[%s4 + $0x40] sm:$0xf] %vm3266, %v3218
  %3284 = vst.msk [vmem:[%s4 + $0x44] sm:$0xf] %vm3266, %v3219
  %3285 = vst.msk [vmem:[%s4 + $0x48] sm:$0xf] %vm3266, %v3220
  %3286 = vst.msk [vmem:[%s4 + $0x4c] sm:$0xf] %vm3266, %v3221
  %3287 = vst.msk [vmem:[%s4 + $0x50] sm:$0xf] %vm3266, %v3222
  %3288 = vst.msk [vmem:[%s4 + $0x54] sm:$0xf] %vm3266, %v3223
  %3289 = vst.msk [vmem:[%s4 + $0x58] sm:$0xf] %vm3266, %v3224
  %3290 = vst.msk [vmem:[%s4 + $0x5c] sm:$0xf] %vm3266, %v3225
  %3291 = vst.msk [vmem:[%s4 + $0x60] sm:$0xf] %vm3266, %v3226
  %3292 = vst.msk [vmem:[%s4 + $0x64] sm:$0xf] %vm3266, %v3227
  %3293 = vst.msk [vmem:[%s4 + $0x68] sm:$0xf] %vm3266, %v3228
  %3294 = vst.msk [vmem:[%s4 + $0x6c] sm:$0xf] %vm3266, %v3229
  %3295 = vst.msk [vmem:[%s4 + $0x70] sm:$0xf] %vm3266, %v3230
  %3296 = vst.msk [vmem:[%s4 + $0x74] sm:$0xf] %vm3266, %v3231
  %3297 = vst.msk [vmem:[%s4 + $0x78] sm:$0xf] %vm3266, %v3232
  %3298 = vst.msk [vmem:[%s4 + $0x7c] sm:$0xf] %vm3266, %v3233
  %3299 = vst.msk [vmem:[%s4 + $0x80] sm:$0xf] %vm3266, %v3234
  %3300 = vst.msk [vmem:[%s4 + $0x84] sm:$0xf] %vm3266, %v3235
  %3301 = vst.msk [vmem:[%s4 + $0x88] sm:$0xf] %vm3266, %v3236
  %3302 = vst.msk [vmem:[%s4 + $0x8c] sm:$0xf] %vm3266, %v3237
  %3303 = vst.msk [vmem:[%s4 + $0x90] sm:$0xf] %vm3266, %v3238
  %3304 = vst.msk [vmem:[%s4 + $0x94] sm:$0xf] %vm3266, %v3239
  %3305 = vst.msk [vmem:[%s4 + $0x98] sm:$0xf] %vm3266, %v3240
  %3306 = vst.msk [vmem:[%s4 + $0x9c] sm:$0xf] %vm3266, %v3241
  %3307 = vst.msk [vmem:[%s4 + $0xa0] sm:$0xf] %vm3266, %v3242
  %3308 = vst.msk [vmem:[%s4 + $0xa4] sm:$0xf] %vm3266, %v3243
  %3309 = vst.msk [vmem:[%s4 + $0xa8] sm:$0xf] %vm3266, %v3244
  %3310 = vst.msk [vmem:[%s4 + $0xac] sm:$0xf] %vm3266, %v3245
  %3311 = vst.msk [vmem:[%s4 + $0xb0] sm:$0xf] %vm3266, %v3246
  %3312 = vst.msk [vmem:[%s4 + $0xb4] sm:$0xf] %vm3266, %v3247
  %3313 = vst.msk [vmem:[%s4 + $0xb8] sm:$0xf] %vm3266, %v3248
  %3314 = vst.msk [vmem:[%s4 + $0xbc] sm:$0xf] %vm3266, %v3249
  %3315 = vst.msk [vmem:[%s4 + $0xc0] sm:$0xf] %vm3266, %v3250
  %3316 = vst.msk [vmem:[%s4 + $0xc4] sm:$0xf] %vm3266, %v3251
  %3317 = vst.msk [vmem:[%s4 + $0xc8] sm:$0xf] %vm3266, %v3252
  %3318 = vst.msk [vmem:[%s4 + $0xcc] sm:$0xf] %vm3266, %v3253
  %3319 = vst.msk [vmem:[%s4 + $0xd0] sm:$0xf] %vm3266, %v3254
  %3320 = vst.msk [vmem:[%s4 + $0xd4] sm:$0xf] %vm3266, %v3255
  %3321 = vst.msk [vmem:[%s4 + $0xd8] sm:$0xf] %vm3266, %v3256
  %3322 = vst.msk [vmem:[%s4 + $0xdc] sm:$0xf] %vm3266, %v3257
  %3323 = vst.msk [vmem:[%s4 + $0xe0] sm:$0xf] %vm3266, %v3258
  %3324 = vst.msk [vmem:[%s4 + $0xe4] sm:$0xf] %vm3266, %v3259
  %3325 = vst.msk [vmem:[%s4 + $0xe8] sm:$0xf] %vm3266, %v3260
  %3326 = vst.msk [vmem:[%s4 + $0xec] sm:$0xf] %vm3266, %v3261
  %3327 = vst.msk [vmem:[%s4 + $0xf0] sm:$0xf] %vm3266, %v3262
  %3328 = vst.msk [vmem:[%s4 + $0xf4] sm:$0xf] %vm3266, %v3263
  %3329 = vst.msk [vmem:[%s4 + $0xf8] sm:$0xf] %vm3266, %v3264
  %3330 = vst.msk [vmem:[%s4 + $0xfc] sm:$0xf] %vm3266, %v3265
  // Predicated region
  $region18: #{tpu_custom_call.1} parent=0 // pred_check
    _
  $region19: #{tpu_custom_call.1} parent=0 // pred_check_branch
    %3332 = sbr.rel (0) target = $region21
  $region20: #{tpu_custom_call.1} parent=0 // pred_region
    _
  $region21: #{tpu_custom_call.1} parent=0 // pred_fallthru
    _
  // Predicated region
  $region22: #{tpu_custom_call.1} parent=0 // pred_check
    _
  $region23: #{tpu_custom_call.1} parent=0 // pred_check_branch
    %3334 = sbr.rel (0) target = $region25
  $region24: #{tpu_custom_call.1} parent=0 // pred_region
    _
  $region25: #{tpu_custom_call.1} parent=0 // pred_fallthru
    _

</llo_original>
